<compile_context>
chip_gen: v7x
topology: tpu7x:2x2x1
jax: 0.10.0
libtpu: 0.0.40
codegen_flags: <defaults>
</compile_context>

<pallas_src>
import functools

import jax
import jax.numpy as jnp
from jax import lax
from jax.experimental import pallas as pl
from jax.experimental.pallas import tpu as pltpu

EPS = 1e-5  # PyTorch BatchNorm2d default eps


def _conv_weight_to_row_toeplitz(w_oihw, W):
    """Torch OIHW 3x3 weight -> per-kh row-Toeplitz matmul weights.

    Returns T of shape (3, (W+2)*Cin, W*Cout) such that for zero-padded
    activation rows xp[row, u*Cin + ci] (u = padded column index):
        y[row, w*Cout + co] = sum_kh  xp[row + kh, :] @ T[kh]
    reproduces the 3x3 'same' convolution.  Only built for tiny Cin.
    # TODO(synk): for Cin >= 128 the Toeplitz weight inflates ~W x and wastes
    # ~(W+2)/3 of the MXU contraction; switch to per-tap (K=Cin) matmuls.
    """
    Cout, Cin, KH, KW = w_oihw.shape
    Wp = W + KW - 1
    w_k = jnp.transpose(w_oihw, (2, 3, 1, 0))           # (KH, KW, Cin, Cout)
    u = jnp.arange(Wp)[:, None, None]
    w = jnp.arange(W)[None, :, None]
    kw = jnp.arange(KW)[None, None, :]
    onehot = (u == w + kw).astype(w_k.dtype)            # (Wp, W, KW)
    T = jnp.einsum('uwk,hkio->huiwo', onehot, w_k)      # (KH, Wp, Cin, W, Cout)
    return T.reshape(KH, Wp * Cin, W * Cout)


def bridge_kernel(x_ref, t1_ref, g1_ref, b1_ref, t2_ref, g2_ref, b2_ref,
                  pool_ref, bcast_ref, mask_ref, o_ref, xp_ref, hp_ref,
                  *, N, H, W, Cin, Cout):
    """Fused Bridge: (conv3x3 -> BN(batch stats) -> ReLU) x 2, all in VMEM.

    x_ref : (N*H, W*Cin)              f32 lane-major input rows
    t1_ref: (3, (W+2)*Cin,  W*Cout)   bf16 row-Toeplitz conv1 weight
    t2_ref: (3, (W+2)*Cout, W*Cout)   bf16 row-Toeplitz conv2 weight
    g*/b* : (1, Cout)                 BN gamma / beta, f32
    pool  : (W*Cout, Cout)            lane -> channel pooling matrix
    bcast : (Cout, W*Cout)            channel -> lane broadcast matrix
    mask  : (R, 1)                    1.0 on valid rows of the stacked grid
    o_ref : (N*H, W*Cout)             f32 lane-dense output rows
    xp_ref: (N*(H+2), (W+2)*Cin)      bf16 scratch, zero-padded input
    hp_ref: (N*(H+2), (W+2)*Cout)     bf16 scratch, zero-padded intermediate
    """
    Hp = H + 2
    Rp = N * Hp                 # stacked padded-row grid (all images)
    R = Rp - 2                  # conv output rows on that grid
    WCout = W * Cout
    inv_cnt = 1.0 / float(N * H * W)

    pool = pool_ref[...]
    bcast = bcast_ref[...]
    mask = mask_ref[...]

    def conv3x3(pad_ref, t_ref):
        # 3 lane-dense row-Toeplitz matmuls: bf16 inputs, f32 accumulation.
        acc = jnp.zeros((R, WCout), jnp.float32)
        for kh in range(3):
            acc = acc + jnp.dot(pad_ref[pl.ds(kh, R), :], t_ref[kh],
                                preferred_element_type=jnp.float32)
        return acc

    def bn_relu(acc, g_ref, b_ref):
        # Training-mode BatchNorm2d with two-pass (centered) variance.  The
        # row mask keeps the cross-image boundary rows of the stacked grid
        # out of the statistics and forces their output to exactly zero.
        mean = jnp.dot(jnp.sum(acc * mask, axis=0, keepdims=True), pool,
                       preferred_element_type=jnp.float32) * inv_cnt
        mean_l = jnp.dot(mean, bcast, preferred_element_type=jnp.float32)
        cen = (acc - mean_l) * mask
        var = jnp.dot(jnp.sum(cen * cen, axis=0, keepdims=True), pool,
                      preferred_element_type=jnp.float32) * inv_cnt
        scale = g_ref[...] * lax.rsqrt(var + EPS)                  # (1, Cout)
        scale_l = jnp.dot(scale, bcast, preferred_element_type=jnp.float32)
        beta_l = jnp.dot(b_ref[...], bcast, preferred_element_type=jnp.float32)
        return jnp.maximum(cen * scale_l + beta_l, 0.0) * mask

    # ---- ConvBlock 1: halo-only zeroing + interior fill (f32 -> bf16 once) -
    zc1 = jnp.zeros((Rp, Cin), xp_ref.dtype)
    xp_ref[:, 0:Cin] = zc1                       # left padded column strip
    xp_ref[:, (W + 1) * Cin:] = zc1              # right padded column strip
    zr1 = jnp.zeros((1, (W + 2) * Cin), xp_ref.dtype)
    for n in range(N):
        xp_ref[pl.ds(n * Hp, 1), :] = zr1                    # top halo row
        xp_ref[pl.ds(n * Hp + H + 1, 1), :] = zr1            # bottom halo row
        xp_ref[pl.ds(n * Hp + 1, H), Cin:(W + 1) * Cin] = (
            x_ref[pl.ds(n * H, H), :].astype(xp_ref.dtype))  # interior rows

    y1 = bn_relu(conv3x3(xp_ref, t1_ref), g1_ref, b1_ref)

    # ---- ConvBlock 2 on the VMEM-resident intermediate (no HBM round trip) -
    zc2 = jnp.zeros((Rp, Cout), hp_ref.dtype)
    hp_ref[:, 0:Cout] = zc2
    hp_ref[:, (W + 1) * Cout:] = zc2
    zr2 = jnp.zeros((1, (W + 2) * Cout), hp_ref.dtype)
    hp_ref[pl.ds(0, 1), :] = zr2
    hp_ref[pl.ds(Rp - 1, 1), :] = zr2
    # BN+ReLU(+bf16 cast) fused into this single interior store; the masked
    # cross-image rows write exact zeros, i.e. the inter-image halo rows.
    hp_ref[pl.ds(1, R), Cout:(W + 1) * Cout] = y1.astype(hp_ref.dtype)

    y2 = bn_relu(conv3x3(hp_ref, t2_ref), g2_ref, b2_ref)

    # Lane-dense output store (W*Cout = 128 lanes at the test shape); the
    # per-image slices drop the boundary rows of the stacked grid.
    for n in range(N):
        o_ref[pl.ds(n * H, H), :] = y2[n * Hp:n * Hp + H, :]


def bridge_pallas(x_nchw, params):
    """Bridge forward. x_nchw: (N, Cin, H, W) f32 -> (N, Cout, H, W) f32.

    params = ((w1, b1, g1, be1), (w2, b2, g2, be2)) in torch layouts.  The
    conv biases are accepted but NOT used: a per-channel bias is cancelled
    exactly by the training-mode BatchNorm mean subtraction.
    """
    (w1, _b1, g1, be1), (w2, _b2, g2, be2) = params
    N, Cin, H, W = x_nchw.shape
    Cout = w1.shape[0]
    Wp, Hp = W + 2, H + 2
    WCout = W * Cout
    R = N * Hp - 2

    # Layout plumbing (outside the kernel): NCHW -> lane-major rows, weights
    # -> bf16 row-Toeplitz matrices, BN params -> (1, Cout).
    # TODO(synk): at production sizes keep the lane-major layout across the
    # surrounding UNet layers so these two XLA transposes (full HBM round
    # trips) disappear.
    x_rows = jnp.transpose(x_nchw, (0, 2, 3, 1)).reshape(N * H, W * Cin)
    x_rows = x_rows.astype(jnp.float32)
    t1 = _conv_weight_to_row_toeplitz(w1, W).astype(jnp.bfloat16)
    t2 = _conv_weight_to_row_toeplitz(w2, W).astype(jnp.bfloat16)
    g1r, be1r = g1.reshape(1, Cout), be1.reshape(1, Cout)
    g2r, be2r = g2.reshape(1, Cout), be2.reshape(1, Cout)

    # Small constants hoisted out of the kernel.
    lanes = jnp.arange(WCout)
    pool = (lanes[:, None] % Cout == jnp.arange(Cout)[None, :]).astype(jnp.float32)
    bcast = pool.T
    mask = ((jnp.arange(R) % Hp) < H).astype(jnp.float32).reshape(R, 1)

    kernel = functools.partial(bridge_kernel, N=N, H=H, W=W, Cin=Cin, Cout=Cout)

    # Explicit scoped-VMEM budget sized from the actual buffers (+ headroom).
    bufs_bytes = (x_rows.size * 4 + t1.size * 2 + t2.size * 2
                  + N * H * WCout * 4                      # output
                  + N * Hp * Wp * Cin * 2                  # padded input (bf16)
                  + N * Hp * Wp * Cout * 2                 # padded interm. (bf16)
                  + (pool.size + bcast.size + mask.size + 4 * Cout) * 4)
    vmem_limit = int(min(32 * 1024 * 1024, max(4 * 1024 * 1024, 8 * bufs_bytes)))

    vmem = pl.BlockSpec(memory_space=pltpu.MemorySpace.VMEM)
    out_rows = pl.pallas_call(
        kernel,
        out_shape=jax.ShapeDtypeStruct((N * H, WCout), jnp.float32),
        in_specs=[vmem] * 10,
        out_specs=vmem,
        scratch_shapes=[
            pltpu.VMEM((N * Hp, Wp * Cin), jnp.bfloat16),   # padded input
            pltpu.VMEM((N * Hp, Wp * Cout), jnp.bfloat16),  # padded intermediate
        ],
        compiler_params=pltpu.CompilerParams(vmem_limit_bytes=vmem_limit),
    )(x_rows, t1, g1r, be1r, t2, g2r, be2r, pool, bcast, mask)

    out_nhwc = out_rows.reshape(N, H, W, Cout)
    return jnp.transpose(out_nhwc, (0, 3, 1, 2))             # NHWC -> NCHW


# ---------------------------------------------------------------------------
# pure-JAX f32 reference (mirrors PyTorch semantics exactly, incl. conv bias)
# ---------------------------------------------------------------------------
def _ref_convblock(x_nchw, w_oihw, b, gamma, beta):
    y = lax.conv_general_dilated(
        x_nchw, w_oihw, window_strides=(1, 1), padding=((1, 1), (1, 1)),
        dimension_numbers=('NCHW', 'OIHW', 'NCHW'))
    y = y + b[None, :, None, None]
    mean = jnp.mean(y, axis=(0, 2, 3), keepdims=True)
    var = jnp.mean((y - mean) ** 2, axis=(0, 2, 3), keepdims=True)
    y = (y - mean) * gamma[None, :, None, None] * lax.rsqrt(var + EPS) \
        + beta[None, :, None, None]
    return jnp.maximum(y, 0.0)


def _ref_bridge(x_nchw, params):
    (w1, b1, g1, be1), (w2, b2, g2, be2) = params
    x = _ref_convblock(x_nchw, w1, b1, g1, be1)
    return _ref_convblock(x, w2, b2, g2, be2)


if __name__ == "__main__":
    key = jax.random.PRNGKey(0)
    N, Cin, Cout, H, W = 2, 4, 8, 16, 16

    kx, kw1, kb1, kw2, kb2 = jax.random.split(key, 5)
    x = jax.random.normal(kx, (N, Cin, H, W), jnp.float32)

    # deterministic synthetic parameters (torch layouts)
    w1 = jax.random.normal(kw1, (Cout, Cin, 3, 3), jnp.float32) * 0.1
    b1 = jax.random.normal(kb1, (Cout,), jnp.float32) * 0.1
    g1 = jnp.ones((Cout,), jnp.float32)    # BN weight init
    be1 = jnp.zeros((Cout,), jnp.float32)  # BN bias init

    w2 = jax.random.normal(kw2, (Cout, Cout, 3, 3), jnp.float32) * 0.1
    b2 = jax.random.normal(kb2, (Cout,), jnp.float32) * 0.1
    g2 = jnp.ones((Cout,), jnp.float32)
    be2 = jnp.zeros((Cout,), jnp.float32)

    params = ((w1, b1, g1, be1), (w2, b2, g2, be2))

    out = bridge_pallas(x, params)
    out = jax.block_until_ready(out)

    ref = _ref_bridge(x, params)
    assert out.shape == (N, Cout, H, W)
    # Tolerance accounts for the deliberate bf16 MXU inputs / bf16 padded
    # intermediate (f32 accumulation); padding, BN stats and ReLU are f32.
    assert jnp.allclose(out, ref, atol=5e-2, rtol=5e-2), "mismatch vs reference"

    print("KERNEL_OK")
</pallas_src>

<mosaic_0001>
module attributes {stable_mosaic.version = 11 : i64} {
  func.func @bridge_kernel(%arg0: memref<32x64xf32, #tpu.memory_space<vmem>>, %arg1: memref<3x72x128xbf16, #tpu.memory_space<vmem>>, %arg2: memref<1x8xf32, #tpu.memory_space<vmem>>, %arg3: memref<1x8xf32, #tpu.memory_space<vmem>>, %arg4: memref<3x144x128xbf16, #tpu.memory_space<vmem>>, %arg5: memref<1x8xf32, #tpu.memory_space<vmem>>, %arg6: memref<1x8xf32, #tpu.memory_space<vmem>>, %arg7: memref<128x8xf32, #tpu.memory_space<vmem>>, %arg8: memref<8x128xf32, #tpu.memory_space<vmem>>, %arg9: memref<34x1xf32, #tpu.memory_space<vmem>>, %arg10: memref<32x128xf32, #tpu.memory_space<vmem>>, %arg11: memref<36x72xbf16, #tpu.memory_space<vmem>>, %arg12: memref<36x144xbf16, #tpu.memory_space<vmem>>) attributes {dimension_semantics = [], scalar_prefetch = 0 : i64, scratch_operands = 2 : i64, tpu.core_type = #tpu.core_type<tc>} {
    %c0 = arith.constant 0 : index
    %c0_0 = arith.constant 0 : index
    %0 = vector.load %arg7[%c0, %c0_0] : memref<128x8xf32, #tpu.memory_space<vmem>>, vector<128x8xf32>
    %c0_1 = arith.constant 0 : index
    %c0_2 = arith.constant 0 : index
    %1 = vector.load %arg8[%c0_1, %c0_2] : memref<8x128xf32, #tpu.memory_space<vmem>>, vector<8x128xf32>
    %c0_3 = arith.constant 0 : index
    %c0_4 = arith.constant 0 : index
    %2 = vector.load %arg9[%c0_3, %c0_4] : memref<34x1xf32, #tpu.memory_space<vmem>>, vector<34x1xf32>
    %cst = arith.constant 0.000000e+00 : bf16
    %3 = vector.broadcast %cst : bf16 to vector<36x4xbf16>
    %c0_5 = arith.constant 0 : index
    %c0_6 = arith.constant 0 : index
    %4 = vector.load %arg11[%c0_5, %c0_6] : memref<36x72xbf16, #tpu.memory_space<vmem>>, vector<36x4xbf16>
    tpu.vector_store %arg11[%c0_5, %c0_6], %3 {strides = array<i32>} : memref<36x72xbf16, #tpu.memory_space<vmem>>, vector<36x4xbf16>,
    %c0_7 = arith.constant 0 : index
    %c68 = arith.constant 68 : index
    %5 = vector.load %arg11[%c0_7, %c68] : memref<36x72xbf16, #tpu.memory_space<vmem>>, vector<36x4xbf16>
    tpu.vector_store %arg11[%c0_7, %c68], %3 {strides = array<i32>} : memref<36x72xbf16, #tpu.memory_space<vmem>>, vector<36x4xbf16>,
    %cst_8 = arith.constant 0.000000e+00 : bf16
    %6 = vector.broadcast %cst_8 : bf16 to vector<1x72xbf16>
    %c0_9 = arith.constant 0 : index
    %c0_10 = arith.constant 0 : index
    %7 = vector.load %arg11[%c0_9, %c0_10] : memref<36x72xbf16, #tpu.memory_space<vmem>>, vector<1x72xbf16>
    tpu.vector_store %arg11[%c0_9, %c0_10], %6 {strides = array<i32>} : memref<36x72xbf16, #tpu.memory_space<vmem>>, vector<1x72xbf16>,
    %c17 = arith.constant 17 : index
    %c0_11 = arith.constant 0 : index
    %8 = vector.load %arg11[%c17, %c0_11] : memref<36x72xbf16, #tpu.memory_space<vmem>>, vector<1x72xbf16>
    tpu.vector_store %arg11[%c17, %c0_11], %6 {strides = array<i32>} : memref<36x72xbf16, #tpu.memory_space<vmem>>, vector<1x72xbf16>,
    %c0_12 = arith.constant 0 : index
    %c0_13 = arith.constant 0 : index
    %9 = vector.load %arg0[%c0_12, %c0_13] : memref<32x64xf32, #tpu.memory_space<vmem>>, vector<16x64xf32>
    %10 = arith.truncf %9 : vector<16x64xf32> to vector<16x64xbf16>
    %c1 = arith.constant 1 : index
    %c4 = arith.constant 4 : index
    %11 = vector.load %arg11[%c1, %c4] : memref<36x72xbf16, #tpu.memory_space<vmem>>, vector<16x64xbf16>
    tpu.vector_store %arg11[%c1, %c4], %10 {strides = array<i32>} : memref<36x72xbf16, #tpu.memory_space<vmem>>, vector<16x64xbf16>,
    %c18 = arith.constant 18 : index
    %c0_14 = arith.constant 0 : index
    %12 = vector.load %arg11[%c18, %c0_14] : memref<36x72xbf16, #tpu.memory_space<vmem>>, vector<1x72xbf16>
    tpu.vector_store %arg11[%c18, %c0_14], %6 {strides = array<i32>} : memref<36x72xbf16, #tpu.memory_space<vmem>>, vector<1x72xbf16>,
    %c35 = arith.constant 35 : index
    %c0_15 = arith.constant 0 : index
    %13 = vector.load %arg11[%c35, %c0_15] : memref<36x72xbf16, #tpu.memory_space<vmem>>, vector<1x72xbf16>
    tpu.vector_store %arg11[%c35, %c0_15], %6 {strides = array<i32>} : memref<36x72xbf16, #tpu.memory_space<vmem>>, vector<1x72xbf16>,
    %c16 = arith.constant 16 : index
    %c0_16 = arith.constant 0 : index
    %14 = vector.load %arg0[%c16, %c0_16] : memref<32x64xf32, #tpu.memory_space<vmem>>, vector<16x64xf32>
    %15 = arith.truncf %14 : vector<16x64xf32> to vector<16x64xbf16>
    %c19 = arith.constant 19 : index
    %c4_17 = arith.constant 4 : index
    %16 = vector.load %arg11[%c19, %c4_17] : memref<36x72xbf16, #tpu.memory_space<vmem>>, vector<16x64xbf16>
    tpu.vector_store %arg11[%c19, %c4_17], %15 {strides = array<i32>} : memref<36x72xbf16, #tpu.memory_space<vmem>>, vector<16x64xbf16>,
    %cst_18 = arith.constant 0.000000e+00 : f32
    %17 = vector.broadcast %cst_18 : f32 to vector<34x128xf32>
    %c0_19 = arith.constant 0 : index
    %c0_20 = arith.constant 0 : index
    %18 = vector.load %arg11[%c0_19, %c0_20] : memref<36x72xbf16, #tpu.memory_space<vmem>>, vector<34x72xbf16>
    %c0_21 = arith.constant 0 : index
    %c0_22 = arith.constant 0 : index
    %c0_23 = arith.constant 0 : index
    %19 = vector.load %arg1[%c0_21, %c0_22, %c0_23] : memref<3x72x128xbf16, #tpu.memory_space<vmem>>, vector<1x72x128xbf16>
    %20 = vector.shape_cast %19 : vector<1x72x128xbf16> to vector<72x128xbf16>
    %cst_24 = arith.constant dense<0.000000e+00> : vector<34x128xf32>
    %21 = tpu.matmul %18, %20, %cst_24 {dimension_numbers = #tpu.dot_dimension_numbers<[1], [0], [0], [1], [0, 0, 1, 1], [], []>} : vector<34x72xbf16>, vector<72x128xbf16>, vector<34x128xf32> -> vector<34x128xf32>
    %22 = arith.addf %17, %21 : vector<34x128xf32>
    %c1_25 = arith.constant 1 : index
    %c0_26 = arith.constant 0 : index
    %23 = vector.load %arg11[%c1_25, %c0_26] : memref<36x72xbf16, #tpu.memory_space<vmem>>, vector<34x72xbf16>
    %c1_27 = arith.constant 1 : index
    %c0_28 = arith.constant 0 : index
    %c0_29 = arith.constant 0 : index
    %24 = vector.load %arg1[%c1_27, %c0_28, %c0_29] : memref<3x72x128xbf16, #tpu.memory_space<vmem>>, vector<1x72x128xbf16>
    %25 = vector.shape_cast %24 : vector<1x72x128xbf16> to vector<72x128xbf16>
    %cst_30 = arith.constant dense<0.000000e+00> : vector<34x128xf32>
    %26 = tpu.matmul %23, %25, %cst_30 {dimension_numbers = #tpu.dot_dimension_numbers<[1], [0], [0], [1], [0, 0, 1, 1], [], []>} : vector<34x72xbf16>, vector<72x128xbf16>, vector<34x128xf32> -> vector<34x128xf32>
    %27 = arith.addf %22, %26 : vector<34x128xf32>
    %c2 = arith.constant 2 : index
    %c0_31 = arith.constant 0 : index
    %28 = vector.load %arg11[%c2, %c0_31] : memref<36x72xbf16, #tpu.memory_space<vmem>>, vector<34x72xbf16>
    %c2_32 = arith.constant 2 : index
    %c0_33 = arith.constant 0 : index
    %c0_34 = arith.constant 0 : index
    %29 = vector.load %arg1[%c2_32, %c0_33, %c0_34] : memref<3x72x128xbf16, #tpu.memory_space<vmem>>, vector<1x72x128xbf16>
    %30 = vector.shape_cast %29 : vector<1x72x128xbf16> to vector<72x128xbf16>
    %cst_35 = arith.constant dense<0.000000e+00> : vector<34x128xf32>
    %31 = tpu.matmul %28, %30, %cst_35 {dimension_numbers = #tpu.dot_dimension_numbers<[1], [0], [0], [1], [0, 0, 1, 1], [], []>} : vector<34x72xbf16>, vector<72x128xbf16>, vector<34x128xf32> -> vector<34x128xf32>
    %32 = arith.addf %27, %31 : vector<34x128xf32>
    %33 = vector.broadcast %2 : vector<34x1xf32> to vector<34x128xf32>
    %34 = arith.mulf %32, %33 : vector<34x128xf32>
    %cst_36 = arith.constant dense<0.000000e+00> : vector<128xf32>
    %35 = vector.multi_reduction <add>, %34, %cst_36 [0] : vector<34x128xf32> to vector<128xf32>
    %36 = vector.shape_cast %35 : vector<128xf32> to vector<1x128xf32>
    %cst_37 = arith.constant dense<0.000000e+00> : vector<1x8xf32>
    %37 = tpu.matmul %36, %0, %cst_37 {dimension_numbers = #tpu.dot_dimension_numbers<[1], [0], [0], [1], [0, 0, 1, 1], [], []>} : vector<1x128xf32>, vector<128x8xf32>, vector<1x8xf32> -> vector<1x8xf32>
    %cst_38 = arith.constant 0.001953125 : f32
    %38 = vector.broadcast %cst_38 : f32 to vector<1x8xf32>
    %39 = arith.mulf %37, %38 : vector<1x8xf32>
    %cst_39 = arith.constant dense<0.000000e+00> : vector<1x128xf32>
    %40 = tpu.matmul %39, %1, %cst_39 {dimension_numbers = #tpu.dot_dimension_numbers<[1], [0], [0], [1], [0, 0, 1, 1], [], []>} : vector<1x8xf32>, vector<8x128xf32>, vector<1x128xf32> -> vector<1x128xf32>
    %41 = vector.broadcast %40 : vector<1x128xf32> to vector<34x128xf32>
    %42 = arith.subf %32, %41 : vector<34x128xf32>
    %43 = vector.broadcast %2 : vector<34x1xf32> to vector<34x128xf32>
    %44 = arith.mulf %42, %43 : vector<34x128xf32>
    %45 = arith.mulf %44, %44 : vector<34x128xf32>
    %cst_40 = arith.constant dense<0.000000e+00> : vector<128xf32>
    %46 = vector.multi_reduction <add>, %45, %cst_40 [0] : vector<34x128xf32> to vector<128xf32>
    %47 = vector.shape_cast %46 : vector<128xf32> to vector<1x128xf32>
    %cst_41 = arith.constant dense<0.000000e+00> : vector<1x8xf32>
    %48 = tpu.matmul %47, %0, %cst_41 {dimension_numbers = #tpu.dot_dimension_numbers<[1], [0], [0], [1], [0, 0, 1, 1], [], []>} : vector<1x128xf32>, vector<128x8xf32>, vector<1x8xf32> -> vector<1x8xf32>
    %cst_42 = arith.constant 0.001953125 : f32
    %49 = vector.broadcast %cst_42 : f32 to vector<1x8xf32>
    %50 = arith.mulf %48, %49 : vector<1x8xf32>
    %c0_43 = arith.constant 0 : index
    %c0_44 = arith.constant 0 : index
    %51 = vector.load %arg2[%c0_43, %c0_44] : memref<1x8xf32, #tpu.memory_space<vmem>>, vector<1x8xf32>
    %cst_45 = arith.constant 9.99999974E-6 : f32
    %52 = vector.broadcast %cst_45 : f32 to vector<1x8xf32>
    %53 = arith.addf %50, %52 : vector<1x8xf32>
    %54 = math.rsqrt %53 : vector<1x8xf32>
    %55 = arith.mulf %51, %54 : vector<1x8xf32>
    %cst_46 = arith.constant dense<0.000000e+00> : vector<1x128xf32>
    %56 = tpu.matmul %55, %1, %cst_46 {dimension_numbers = #tpu.dot_dimension_numbers<[1], [0], [0], [1], [0, 0, 1, 1], [], []>} : vector<1x8xf32>, vector<8x128xf32>, vector<1x128xf32> -> vector<1x128xf32>
    %c0_47 = arith.constant 0 : index
    %c0_48 = arith.constant 0 : index
    %57 = vector.load %arg3[%c0_47, %c0_48] : memref<1x8xf32, #tpu.memory_space<vmem>>, vector<1x8xf32>
    %cst_49 = arith.constant dense<0.000000e+00> : vector<1x128xf32>
    %58 = tpu.matmul %57, %1, %cst_49 {dimension_numbers = #tpu.dot_dimension_numbers<[1], [0], [0], [1], [0, 0, 1, 1], [], []>} : vector<1x8xf32>, vector<8x128xf32>, vector<1x128xf32> -> vector<1x128xf32>
    %59 = vector.broadcast %56 : vector<1x128xf32> to vector<34x128xf32>
    %60 = arith.mulf %44, %59 : vector<34x128xf32>
    %61 = vector.broadcast %58 : vector<1x128xf32> to vector<34x128xf32>
    %62 = arith.addf %60, %61 : vector<34x128xf32>
    %cst_50 = arith.constant 0.000000e+00 : f32
    %63 = vector.broadcast %cst_50 : f32 to vector<34x128xf32>
    %64 = arith.maximumf %62, %63 : vector<34x128xf32>
    %65 = vector.broadcast %2 : vector<34x1xf32> to vector<34x128xf32>
    %66 = arith.mulf %64, %65 : vector<34x128xf32>
    %cst_51 = arith.constant 0.000000e+00 : bf16
    %67 = vector.broadcast %cst_51 : bf16 to vector<36x8xbf16>
    %c0_52 = arith.constant 0 : index
    %c0_53 = arith.constant 0 : index
    %68 = vector.load %arg12[%c0_52, %c0_53] : memref<36x144xbf16, #tpu.memory_space<vmem>>, vector<36x8xbf16>
    tpu.vector_store %arg12[%c0_52, %c0_53], %67 {strides = array<i32>} : memref<36x144xbf16, #tpu.memory_space<vmem>>, vector<36x8xbf16>,
    %c0_54 = arith.constant 0 : index
    %c136 = arith.constant 136 : index
    %69 = vector.load %arg12[%c0_54, %c136] : memref<36x144xbf16, #tpu.memory_space<vmem>>, vector<36x8xbf16>
    tpu.vector_store %arg12[%c0_54, %c136], %67 {strides = array<i32>} : memref<36x144xbf16, #tpu.memory_space<vmem>>, vector<36x8xbf16>,
    %cst_55 = arith.constant 0.000000e+00 : bf16
    %70 = vector.broadcast %cst_55 : bf16 to vector<1x144xbf16>
    %c0_56 = arith.constant 0 : index
    %c0_57 = arith.constant 0 : index
    %71 = vector.load %arg12[%c0_56, %c0_57] : memref<36x144xbf16, #tpu.memory_space<vmem>>, vector<1x144xbf16>
    tpu.vector_store %arg12[%c0_56, %c0_57], %70 {strides = array<i32>} : memref<36x144xbf16, #tpu.memory_space<vmem>>, vector<1x144xbf16>,
    %c35_58 = arith.constant 35 : index
    %c0_59 = arith.constant 0 : index
    %72 = vector.load %arg12[%c35_58, %c0_59] : memref<36x144xbf16, #tpu.memory_space<vmem>>, vector<1x144xbf16>
    tpu.vector_store %arg12[%c35_58, %c0_59], %70 {strides = array<i32>} : memref<36x144xbf16, #tpu.memory_space<vmem>>, vector<1x144xbf16>,
    %73 = arith.truncf %66 : vector<34x128xf32> to vector<34x128xbf16>
    %c1_60 = arith.constant 1 : index
    %c8 = arith.constant 8 : index
    %74 = vector.load %arg12[%c1_60, %c8] : memref<36x144xbf16, #tpu.memory_space<vmem>>, vector<34x128xbf16>
    tpu.vector_store %arg12[%c1_60, %c8], %73 {strides = array<i32>} : memref<36x144xbf16, #tpu.memory_space<vmem>>, vector<34x128xbf16>,
    %cst_61 = arith.constant 0.000000e+00 : f32
    %75 = vector.broadcast %cst_61 : f32 to vector<34x128xf32>
    %c0_62 = arith.constant 0 : index
    %c0_63 = arith.constant 0 : index
    %76 = vector.load %arg12[%c0_62, %c0_63] : memref<36x144xbf16, #tpu.memory_space<vmem>>, vector<34x144xbf16>
    %c0_64 = arith.constant 0 : index
    %c0_65 = arith.constant 0 : index
    %c0_66 = arith.constant 0 : index
    %77 = vector.load %arg4[%c0_64, %c0_65, %c0_66] : memref<3x144x128xbf16, #tpu.memory_space<vmem>>, vector<1x144x128xbf16>
    %78 = vector.shape_cast %77 : vector<1x144x128xbf16> to vector<144x128xbf16>
    %cst_67 = arith.constant dense<0.000000e+00> : vector<34x128xf32>
    %79 = tpu.matmul %76, %78, %cst_67 {dimension_numbers = #tpu.dot_dimension_numbers<[1], [0], [0], [1], [0, 0, 1, 1], [], []>} : vector<34x144xbf16>, vector<144x128xbf16>, vector<34x128xf32> -> vector<34x128xf32>
    %80 = arith.addf %75, %79 : vector<34x128xf32>
    %c1_68 = arith.constant 1 : index
    %c0_69 = arith.constant 0 : index
    %81 = vector.load %arg12[%c1_68, %c0_69] : memref<36x144xbf16, #tpu.memory_space<vmem>>, vector<34x144xbf16>
    %c1_70 = arith.constant 1 : index
    %c0_71 = arith.constant 0 : index
    %c0_72 = arith.constant 0 : index
    %82 = vector.load %arg4[%c1_70, %c0_71, %c0_72] : memref<3x144x128xbf16, #tpu.memory_space<vmem>>, vector<1x144x128xbf16>
    %83 = vector.shape_cast %82 : vector<1x144x128xbf16> to vector<144x128xbf16>
    %cst_73 = arith.constant dense<0.000000e+00> : vector<34x128xf32>
    %84 = tpu.matmul %81, %83, %cst_73 {dimension_numbers = #tpu.dot_dimension_numbers<[1], [0], [0], [1], [0, 0, 1, 1], [], []>} : vector<34x144xbf16>, vector<144x128xbf16>, vector<34x128xf32> -> vector<34x128xf32>
    %85 = arith.addf %80, %84 : vector<34x128xf32>
    %c2_74 = arith.constant 2 : index
    %c0_75 = arith.constant 0 : index
    %86 = vector.load %arg12[%c2_74, %c0_75] : memref<36x144xbf16, #tpu.memory_space<vmem>>, vector<34x144xbf16>
    %c2_76 = arith.constant 2 : index
    %c0_77 = arith.constant 0 : index
    %c0_78 = arith.constant 0 : index
    %87 = vector.load %arg4[%c2_76, %c0_77, %c0_78] : memref<3x144x128xbf16, #tpu.memory_space<vmem>>, vector<1x144x128xbf16>
    %88 = vector.shape_cast %87 : vector<1x144x128xbf16> to vector<144x128xbf16>
    %cst_79 = arith.constant dense<0.000000e+00> : vector<34x128xf32>
    %89 = tpu.matmul %86, %88, %cst_79 {dimension_numbers = #tpu.dot_dimension_numbers<[1], [0], [0], [1], [0, 0, 1, 1], [], []>} : vector<34x144xbf16>, vector<144x128xbf16>, vector<34x128xf32> -> vector<34x128xf32>
    %90 = arith.addf %85, %89 : vector<34x128xf32>
    %91 = vector.broadcast %2 : vector<34x1xf32> to vector<34x128xf32>
    %92 = arith.mulf %90, %91 : vector<34x128xf32>
    %cst_80 = arith.constant dense<0.000000e+00> : vector<128xf32>
    %93 = vector.multi_reduction <add>, %92, %cst_80 [0] : vector<34x128xf32> to vector<128xf32>
    %94 = vector.shape_cast %93 : vector<128xf32> to vector<1x128xf32>
    %cst_81 = arith.constant dense<0.000000e+00> : vector<1x8xf32>
    %95 = tpu.matmul %94, %0, %cst_81 {dimension_numbers = #tpu.dot_dimension_numbers<[1], [0], [0], [1], [0, 0, 1, 1], [], []>} : vector<1x128xf32>, vector<128x8xf32>, vector<1x8xf32> -> vector<1x8xf32>
    %cst_82 = arith.constant 0.001953125 : f32
    %96 = vector.broadcast %cst_82 : f32 to vector<1x8xf32>
    %97 = arith.mulf %95, %96 : vector<1x8xf32>
    %cst_83 = arith.constant dense<0.000000e+00> : vector<1x128xf32>
    %98 = tpu.matmul %97, %1, %cst_83 {dimension_numbers = #tpu.dot_dimension_numbers<[1], [0], [0], [1], [0, 0, 1, 1], [], []>} : vector<1x8xf32>, vector<8x128xf32>, vector<1x128xf32> -> vector<1x128xf32>
    %99 = vector.broadcast %98 : vector<1x128xf32> to vector<34x128xf32>
    %100 = arith.subf %90, %99 : vector<34x128xf32>
    %101 = vector.broadcast %2 : vector<34x1xf32> to vector<34x128xf32>
    %102 = arith.mulf %100, %101 : vector<34x128xf32>
    %103 = arith.mulf %102, %102 : vector<34x128xf32>
    %cst_84 = arith.constant dense<0.000000e+00> : vector<128xf32>
    %104 = vector.multi_reduction <add>, %103, %cst_84 [0] : vector<34x128xf32> to vector<128xf32>
    %105 = vector.shape_cast %104 : vector<128xf32> to vector<1x128xf32>
    %cst_85 = arith.constant dense<0.000000e+00> : vector<1x8xf32>
    %106 = tpu.matmul %105, %0, %cst_85 {dimension_numbers = #tpu.dot_dimension_numbers<[1], [0], [0], [1], [0, 0, 1, 1], [], []>} : vector<1x128xf32>, vector<128x8xf32>, vector<1x8xf32> -> vector<1x8xf32>
    %cst_86 = arith.constant 0.001953125 : f32
    %107 = vector.broadcast %cst_86 : f32 to vector<1x8xf32>
    %108 = arith.mulf %106, %107 : vector<1x8xf32>
    %c0_87 = arith.constant 0 : index
    %c0_88 = arith.constant 0 : index
    %109 = vector.load %arg5[%c0_87, %c0_88] : memref<1x8xf32, #tpu.memory_space<vmem>>, vector<1x8xf32>
    %cst_89 = arith.constant 9.99999974E-6 : f32
    %110 = vector.broadcast %cst_89 : f32 to vector<1x8xf32>
    %111 = arith.addf %108, %110 : vector<1x8xf32>
    %112 = math.rsqrt %111 : vector<1x8xf32>
    %113 = arith.mulf %109, %112 : vector<1x8xf32>
    %cst_90 = arith.constant dense<0.000000e+00> : vector<1x128xf32>
    %114 = tpu.matmul %113, %1, %cst_90 {dimension_numbers = #tpu.dot_dimension_numbers<[1], [0], [0], [1], [0, 0, 1, 1], [], []>} : vector<1x8xf32>, vector<8x128xf32>, vector<1x128xf32> -> vector<1x128xf32>
    %c0_91 = arith.constant 0 : index
    %c0_92 = arith.constant 0 : index
    %115 = vector.load %arg6[%c0_91, %c0_92] : memref<1x8xf32, #tpu.memory_space<vmem>>, vector<1x8xf32>
    %cst_93 = arith.constant dense<0.000000e+00> : vector<1x128xf32>
    %116 = tpu.matmul %115, %1, %cst_93 {dimension_numbers = #tpu.dot_dimension_numbers<[1], [0], [0], [1], [0, 0, 1, 1], [], []>} : vector<1x8xf32>, vector<8x128xf32>, vector<1x128xf32> -> vector<1x128xf32>
    %117 = vector.broadcast %114 : vector<1x128xf32> to vector<34x128xf32>
    %118 = arith.mulf %102, %117 : vector<34x128xf32>
    %119 = vector.broadcast %116 : vector<1x128xf32> to vector<34x128xf32>
    %120 = arith.addf %118, %119 : vector<34x128xf32>
    %cst_94 = arith.constant 0.000000e+00 : f32
    %121 = vector.broadcast %cst_94 : f32 to vector<34x128xf32>
    %122 = arith.maximumf %120, %121 : vector<34x128xf32>
    %123 = vector.broadcast %2 : vector<34x1xf32> to vector<34x128xf32>
    %124 = arith.mulf %122, %123 : vector<34x128xf32>
    %125 = vector.extract_strided_slice %124 {offsets = [0, 0], sizes = [16, 128], strides = [1, 1]} : vector<34x128xf32> to vector<16x128xf32>
    %c0_95 = arith.constant 0 : index
    %c0_96 = arith.constant 0 : index
    %126 = vector.load %arg10[%c0_95, %c0_96] : memref<32x128xf32, #tpu.memory_space<vmem>>, vector<16x128xf32>
    tpu.vector_store %arg10[%c0_95, %c0_96], %125 {strides = array<i32>} : memref<32x128xf32, #tpu.memory_space<vmem>>, vector<16x128xf32>,
    %127 = vector.extract_strided_slice %124 {offsets = [18, 0], sizes = [16, 128], strides = [1, 1]} : vector<34x128xf32> to vector<16x128xf32>
    %c16_97 = arith.constant 16 : index
    %c0_98 = arith.constant 0 : index
    %128 = vector.load %arg10[%c16_97, %c0_98] : memref<32x128xf32, #tpu.memory_space<vmem>>, vector<16x128xf32>
    tpu.vector_store %arg10[%c16_97, %c0_98], %127 {strides = array<i32>} : memref<32x128xf32, #tpu.memory_space<vmem>>, vector<16x128xf32>,
    return
  }
}

</mosaic_0001>

<llo_original>
// kernel: tpu_custom_call.1
$region0: #{tpu_custom_call.1}
  #allocation0 [shape = 'u32[]', space=smem, size = 0x4, offset = 0x4, fixed_abs, tag = 'smem constant byte address 0x4 - core index']
  #allocation1 [shape = 'u32[144,128]{1,0:T(1,128)}', space=vmem, size = 0x12000, scoped, tag = 'internal scratch']
  #allocation2 [shape = 'bf16[36,72]{1,0:T(8,128)(2,1)}', space=vmem, size = 0x2800, scoped, tag = 'scratch operand']
  #allocation3 [shape = 'bf16[36,144]{1,0:T(8,128)(2,1)}', space=vmem, size = 0x5000, scoped, tag = 'scratch operand']
  %s0 = inlined_call_operand.vmem [shape: f32[32,64], index: 0, kind: input, shape index: {}]
  %s1 = inlined_call_operand.vmem [shape: bf16[3,72,128], index: 1, kind: input, shape index: {}]
  %s2 = inlined_call_operand.vmem [shape: f32[1,8], index: 2, kind: input, shape index: {}]
  %s3 = inlined_call_operand.vmem [shape: f32[1,8], index: 3, kind: input, shape index: {}]
  %s4 = inlined_call_operand.hbm [shape: bf16[3,144,128], index: 4, kind: input, shape index: {}]
  %s5 = inlined_call_operand.vmem [shape: f32[1,8], index: 5, kind: input, shape index: {}]
  %s6 = inlined_call_operand.vmem [shape: f32[1,8], index: 6, kind: input, shape index: {}]
  %s7 = inlined_call_operand.vmem [shape: f32[128,8], index: 7, kind: input, shape index: {}]
  %s8 = inlined_call_operand.vmem [shape: f32[8,128], index: 8, kind: input, shape index: {}]
  %s9 = inlined_call_operand.vmem [shape: f32[34,1], index: 9, kind: input, shape index: {}]
  %s10 = inlined_call_operand.hbm [shape: f32[32,128], index: 10, kind: output, shape index: {}]
  %s11 = sld [smem:[#allocation0]]
  $region54: #{tpu_custom_call.1} parent=0
    _
  %s13 = ssub.s32 1, %s11
  %s14 = scalar_select 0, %s13, %s11
  $region1: #{tpu_custom_call.1} parent=0
    #allocation4 [shape = 'u8[110592]{0}', space=vmem, size = 0x1b000, scoped, tag = 'input window, operand 4, single buffered']
    #allocation5 [shape = 's32[1]{0}', space=sflag, size = 0x4, scoped, tag = 'scoped memory for tpu_custom_call.1']
    #allocation6 [shape = 's32[1]{0}', space=sflag, size = 0x4, scoped, tag = 'scoped memory for tpu_custom_call.1']
    #allocation7 [shape = 'u8[16384]{0}', space=vmem, size = 0x4000, scoped, tag = 'output window, operand 0, single buffered']
    %15 = vsyncpa [#allocation5], 0
    %16 = vsyncpa [#allocation6], 0
    // Predicated region
    $region2: #{tpu_custom_call.1} parent=1 // pred_check
      _
    $region3: #{tpu_custom_call.1} parent=1 // pred_check_branch
      %18 = sbr.rel (0) target = $region5
    $region4: #{tpu_custom_call.1} parent=1 // pred_region
      _
    $region5: #{tpu_custom_call.1} parent=1 // pred_fallthru
      _
    // Predicated region
    $region6: #{tpu_custom_call.1} parent=1 // pred_check
      _
    $region7: #{tpu_custom_call.1} parent=1 // pred_check_branch
      %20 = sbr.rel (0) target = $region9
    $region8: #{tpu_custom_call.1} parent=1 // pred_region
      _
    $region9: #{tpu_custom_call.1} parent=1 // pred_fallthru
      _
    // Predicated region
    $region10: #{tpu_custom_call.1} parent=1 // pred_check
      _
    $region11: #{tpu_custom_call.1} parent=1 // pred_check_branch
      %22 = sbr.rel (0) target = $region13
    $region12: #{tpu_custom_call.1} parent=1 // pred_region
      _
    $region13: #{tpu_custom_call.1} parent=1 // pred_fallthru
      _
    // Predicated region
    $region14: #{tpu_custom_call.1} parent=1 // pred_check
      _
    $region15: #{tpu_custom_call.1} parent=1 // pred_check_branch
      %24 = sbr.rel (0) target = $region17
    $region16: #{tpu_custom_call.1} parent=1 // pred_region
      _
    $region17: #{tpu_custom_call.1} parent=1 // pred_fallthru
      _
    // Predicated region
    $region18: #{tpu_custom_call.1} parent=1 // pred_check
      _
    $region19: #{tpu_custom_call.1} parent=1 // pred_check_branch
      %26 = sbr.rel (0) target = $region21
    $region20: #{tpu_custom_call.1} parent=1 // pred_region
      %s28 = ssub.s32 3456, 3456
      %29 = vsyncadd [#allocation5], %s28
      %s30 = sshll.u32 [#allocation4], 4
      %s31 = int_to_ptr.vmem [resolvable:$true] %s30
      %36 = dma.hbm_to_vmem [thread:$0]  %s4, 3456, %s31, [#allocation5], 64, 64, 4
    $region21: #{tpu_custom_call.1} parent=1 // pred_fallthru
      _
    // Predicated region
    $region22: #{tpu_custom_call.1} parent=1 // pred_check
      _
    $region23: #{tpu_custom_call.1} parent=1 // pred_check_branch
      %38 = sbr.rel (0) target = $region25
    $region24: #{tpu_custom_call.1} parent=1 // pred_region
      _
    $region25: #{tpu_custom_call.1} parent=1 // pred_fallthru
      _
    // Predicated region
    $region26: #{tpu_custom_call.1} parent=1 // pred_check
      _
    $region27: #{tpu_custom_call.1} parent=1 // pred_check_branch
      %40 = sbr.rel (0) target = $region29
    $region28: #{tpu_custom_call.1} parent=1 // pred_region
      _
    $region29: #{tpu_custom_call.1} parent=1 // pred_fallthru
      _
    // Predicated region
    $region30: #{tpu_custom_call.1} parent=1 // pred_check
      _
    $region31: #{tpu_custom_call.1} parent=1 // pred_check_branch
      %42 = sbr.rel (0) target = $region33
    $region32: #{tpu_custom_call.1} parent=1 // pred_region
      _
    $region33: #{tpu_custom_call.1} parent=1 // pred_fallthru
      _
    // Predicated region
    $region34: #{tpu_custom_call.1} parent=1 // pred_check
      _
    $region35: #{tpu_custom_call.1} parent=1 // pred_check_branch
      %44 = sbr.rel (0) target = $region37
    $region36: #{tpu_custom_call.1} parent=1 // pred_region
      _
    $region37: #{tpu_custom_call.1} parent=1 // pred_fallthru
      _
    // Predicated region
    $region38: #{tpu_custom_call.1} parent=1 // pred_check
      _
    $region39: #{tpu_custom_call.1} parent=1 // pred_check_branch
      %46 = sbr.rel (0) target = $region41
    $region40: #{tpu_custom_call.1} parent=1 // pred_region
      _
    $region41: #{tpu_custom_call.1} parent=1 // pred_fallthru
      _
    // Predicated region
    $region42: #{tpu_custom_call.1} parent=1 // pred_check
      _
    $region43: #{tpu_custom_call.1} parent=1 // pred_check_branch
      %48 = sbr.rel (0) target = $region45
    $region44: #{tpu_custom_call.1} parent=1 // pred_region
      %49 = dma.done [#allocation5], 3456
    $region45: #{tpu_custom_call.1} parent=1 // pred_fallthru
      _
    %v51 = vld [vmem:[%s7] sm:$0xff]
    %v52 = vld [vmem:[%s7 + $0x8] sm:$0xff]
    %v53 = vld [vmem:[%s7 + $0x10] sm:$0xff]
    %v54 = vld [vmem:[%s7 + $0x18] sm:$0xff]
    %v55 = vld [vmem:[%s7 + $0x20] sm:$0xff]
    %v56 = vld [vmem:[%s7 + $0x28] sm:$0xff]
    %v57 = vld [vmem:[%s7 + $0x30] sm:$0xff]
    %v58 = vld [vmem:[%s7 + $0x38] sm:$0xff]
    %v59 = vld [vmem:[%s7 + $0x40] sm:$0xff]
    %v60 = vld [vmem:[%s7 + $0x48] sm:$0xff]
    %v61 = vld [vmem:[%s7 + $0x50] sm:$0xff]
    %v62 = vld [vmem:[%s7 + $0x58] sm:$0xff]
    %v63 = vld [vmem:[%s7 + $0x60] sm:$0xff]
    %v64 = vld [vmem:[%s7 + $0x68] sm:$0xff]
    %v65 = vld [vmem:[%s7 + $0x70] sm:$0xff]
    %v66 = vld [vmem:[%s7 + $0x78] sm:$0xff]
    %v67 = vld [vmem:[%s8] sm:$0xff]
    %v68 = vld [vmem:[%s9] sm:$0xff]
    %v69 = vld [vmem:[%s9 + $0x8] sm:$0xff]
    %v70 = vld [vmem:[%s9 + $0x10] sm:$0xff]
    %v71 = vld [vmem:[%s9 + $0x18] sm:$0xff]
    %v72 = vld [vmem:[%s9 + $0x20] sm:$0x3]
    %vm73 = vcmask 27648
    %74 = vst.msk [vmem:[#allocation2] sm:$0xf] %vm73, 0
    %75 = vst.msk [vmem:[#allocation2 + $0x4] sm:$0xf] %vm73, 0
    %76 = vst.msk [vmem:[#allocation2 + $0x8] sm:$0xf] %vm73, 0
    %77 = vst.msk [vmem:[#allocation2 + $0xc] sm:$0xf] %vm73, 0
    %vm78 = vcmask 25600
    %79 = vst.msk [vmem:[#allocation2 + $0x10] sm:$0x3] %vm78, 0
    %vm80 = vcmask 585248
    %81 = vst.msk [vmem:[#allocation2] sm:$0xf] %vm80, 0
    %82 = vst.msk [vmem:[#allocation2 + $0x4] sm:$0xf] %vm80, 0
    %83 = vst.msk [vmem:[#allocation2 + $0x8] sm:$0xf] %vm80, 0
    %84 = vst.msk [vmem:[#allocation2 + $0xc] sm:$0xf] %vm80, 0
    %vm85 = vcmask 583200
    %86 = vst.msk [vmem:[#allocation2 + $0x10] sm:$0x3] %vm85, 0
    %vm87 = vcmask 581632
    %vm88 = vsmask.f32 256
    %vm89 = vmand %vm87, %vm88
    %v90 = vld [vmem:[#allocation2] sm:$0x1]
    %v91 = vsel %vm89, 0, %v90
    %92 = vst [vmem:[#allocation2] sm:$0x1] %v91
    %vm93 = vsmask.f32 7938
    %vm94 = vmand %vm87, %vm93
    %v95 = vld [vmem:[#allocation2 + $0x8] sm:$0x1]
    %v96 = vsel %vm94, 0, %v95
    %97 = vst [vmem:[#allocation2 + $0x8] sm:$0x1] %v96
    %v98 = vld [vmem:[%s0] sm:$0xff]
    %v99 = vld [vmem:[%s0 + $0x8] sm:$0xff]
    %v100 = vpack.c.bf16 %v99, %v98
    %v102 = vunpack.c.l.b16 %v100
    %v103 = vunpack.c.h.b16 %v100
    %v104 = vpack.c.b16 %v102, %v102
    %v105 = vpack.c.b16 %v103, %v103
    %vm106 = vsmask.f32 4368
    %vm107 = vmor %vm88, %vm106
    %v109 = vshrl.u32 %v104, 16
    %v111 = vrot.slane %v109, 7
    %v112 = vshll.u32 %v104, 16
    %v114 = vor.u32 %v111, %v112
    %v115 = vrot.slane %v111, 4
    %v117 = vshrl.u32 %v105, 16
    %v119 = vrot.slane %v117, 7
    %v120 = vshll.u32 %v105, 16
    %v122 = vor.u32 %v119, %v120
    %v123 = vsel %vm107, %v115, %v122
    %v124 = vrot.slane %v119, 4
    %125 = vrot.lane.b32.xlu0 %v114, 4
    %v126 = vpop.permute.xlu0 %125
    %127 = vrot.lane.b32.xlu0 %v123, 4
    %v128 = vpop.permute.xlu0 %127
    %129 = vrot.lane.b32.xlu0 %v124, 4
    %v130 = vpop.permute.xlu0 %129
    %vm134 = vcmask 551968
    %vm135 = vmand %vm134, %vm93
    %v136 = vld [vmem:[#allocation2] sm:$0xf]
    %v137 = vsel %vm135, %v126, %v136
    %138 = vst [vmem:[#allocation2] sm:$0xf] %v137
    %vm139 = vcmask 551968
    %140 = vst.msk [vmem:[#allocation2 + $0x4] sm:$0xf] %vm139, %v128
    %vm141 = vcmask 548896
    %vm142 = vmand %vm141, %vm88
    %v143 = vld [vmem:[#allocation2 + $0x8] sm:$0x1]
    %v144 = vsel %vm142, %v130, %v143
    %145 = vst [vmem:[#allocation2 + $0x8] sm:$0x1] %v144
    %vm146 = vcmask 582657
    %vm147 = vsmask.f32 1280
    %vm148 = vmand %vm146, %vm147
    %v149 = vld [vmem:[#allocation2 + $0x8] sm:$0x2]
    %v150 = vsel %vm148, 0, %v149
    %151 = vst [vmem:[#allocation2 + $0x8] sm:$0x2] %v150
    %vm152 = vsmask.f32 7942
    %vm153 = vmand %vm146, %vm152
    %v154 = vld [vmem:[#allocation2 + $0x10] sm:$0x2]
    %v155 = vsel %vm153, 0, %v154
    %156 = vst [vmem:[#allocation2 + $0x10] sm:$0x2] %v155
    %v157 = vld [vmem:[%s0 + $0x10] sm:$0xff]
    %v158 = vld [vmem:[%s0 + $0x18] sm:$0xff]
    %v159 = vpack.c.bf16 %v158, %v157
    %v161 = vunpack.c.l.b16 %v159
    %v162 = vunpack.c.h.b16 %v159
    %v163 = vpack.c.b16 %v161, %v161
    %v164 = vpack.c.b16 %v162, %v162
    %vm165 = vsmask.f32 5392
    %vm166 = vmor %vm147, %vm165
    %v168 = vshrl.u32 %v163, 16
    %v170 = vrot.slane %v168, 6
    %v171 = vshll.u32 %v163, 16
    %v173 = vrot.slane %v171, 7
    %v174 = vor.u32 %v170, %v173
    %v175 = vrot.slane %v174, 4
    %v177 = vshrl.u32 %v164, 16
    %v179 = vrot.slane %v177, 6
    %v180 = vshll.u32 %v164, 16
    %v182 = vrot.slane %v180, 7
    %v183 = vor.u32 %v179, %v182
    %v184 = vsel %vm166, %v175, %v183
    %v185 = vrot.slane %v183, 4
    %186 = vrot.lane.b32.xlu0 %v174, 4
    %v187 = vpop.permute.xlu0 %186
    %188 = vrot.lane.b32.xlu0 %v184, 4
    %v189 = vpop.permute.xlu0 %188
    %190 = vrot.lane.b32.xlu0 %v185, 4
    %v191 = vpop.permute.xlu0 %190
    %vm195 = vcmask 551969
    %vm196 = vmand %vm195, %vm152
    %v197 = vld [vmem:[#allocation2 + $0x8] sm:$0xe]
    %v198 = vsel %vm196, %v187, %v197
    %199 = vst [vmem:[#allocation2 + $0x8] sm:$0xe] %v198
    %200 = vst.msk [vmem:[#allocation2 + $0xc] sm:$0xf] %vm139, %v189
    %vm201 = vcmask 549920
    %vm202 = vmand %vm201, %vm147
    %v203 = vld [vmem:[#allocation2 + $0x10] sm:$0x3]
    %v204 = vsel %vm202, %v191, %v203
    %205 = vst [vmem:[#allocation2 + $0x10] sm:$0x3] %v204
    %v206 = vld [vmem:[#allocation2] sm:$0xf]
    %v207 = vld [vmem:[#allocation2 + $0x4] sm:$0xf]
    %v208 = vld [vmem:[#allocation2 + $0x8] sm:$0xf]
    %v209 = vld [vmem:[#allocation2 + $0xc] sm:$0xf]
    %v210 = vld [vmem:[#allocation2 + $0x10] sm:$0x1]
    %v211 = vld [vmem:[%s1] sm:$0xf]
    %v212 = vld [vmem:[%s1 + $0x4] sm:$0xf]
    %v213 = vld [vmem:[%s1 + $0x8] sm:$0xf]
    %v214 = vld [vmem:[%s1 + $0xc] sm:$0xf]
    %v215 = vld [vmem:[%s1 + $0x10] sm:$0xf]
    %v216 = vld [vmem:[%s1 + $0x14] sm:$0xf]
    %v217 = vld [vmem:[%s1 + $0x18] sm:$0xf]
    %v218 = vld [vmem:[%s1 + $0x1c] sm:$0xf]
    %v219 = vld [vmem:[%s1 + $0x20] sm:$0xf]
    %v220 = vld [vmem:[#allocation2 + $0x10] sm:$0x3]
    %s221 = scalar_lea.vmem %s1, 36
    %v222 = vld [vmem:[%s221] sm:$0xf]
    %v223 = vld [vmem:[%s221 + $0x4] sm:$0xf]
    %v224 = vld [vmem:[%s221 + $0x8] sm:$0xf]
    %v225 = vld [vmem:[%s221 + $0xc] sm:$0xf]
    %v226 = vld [vmem:[%s221 + $0x10] sm:$0xf]
    %v227 = vld [vmem:[%s221 + $0x14] sm:$0xf]
    %v228 = vld [vmem:[%s221 + $0x18] sm:$0xf]
    %v229 = vld [vmem:[%s221 + $0x1c] sm:$0xf]
    %v230 = vld [vmem:[%s221 + $0x20] sm:$0xf]
    %v236 = vunpack.c.l.b16 %v206
    %v237 = vunpack.c.l.b16 %v207
    %v238 = vunpack.c.l.b16 %v208
    %v239 = vunpack.c.l.b16 %v209
    %v240 = vunpack.c.l.b16 %v220
    %v241 = vpack.c.b16 %v237, %v236
    %v242 = vpack.c.b16 %v239, %v238
    %v243 = vpack.c.b16 %v240, %v240
    %vm244 = vsmask.f32 7424
    %v246 = vshrl.u32 %v241, 16
    %v248 = vshll.u32 %v241, 16
    %v250 = vrot.slane %v248, 1
    %v251 = vor.u32 %v246, %v250
    %v253 = vshll.u32 %v242, 16
    %v255 = vrot.slane %v253, 1
    %v256 = vsel %vm244, %v251, %v255
    %v257 = vshrl.u32 %v242, 16
    %v259 = vor.u32 %v257, %v255
    %v261 = vshll.u32 %v243, 16
    %v263 = vrot.slane %v261, 1
    %v264 = vsel %vm244, %v259, %v263
    %v265 = vshrl.u32 %v243, 16
    %v267 = vor.u32 %v265, %v263
    %v277 = vunpack.c.l.b16 %v222
    %v278 = vunpack.c.l.b16 %v223
    %v279 = vunpack.c.l.b16 %v224
    %v280 = vunpack.c.l.b16 %v225
    %v281 = vunpack.c.l.b16 %v226
    %v282 = vunpack.c.l.b16 %v227
    %v283 = vunpack.c.l.b16 %v228
    %v284 = vunpack.c.l.b16 %v229
    %v285 = vunpack.c.l.b16 %v230
    %v286 = vpack.c.b16 %v278, %v277
    %v287 = vpack.c.b16 %v280, %v279
    %v288 = vpack.c.b16 %v282, %v281
    %v289 = vpack.c.b16 %v284, %v283
    %v290 = vpack.c.b16 %v285, %v285
    %vm295 = vcmask 588800
    %v297 = vsel %vm295, %v256, 0
    %v300 = vsel %vm295, %v264, 0
    %v303 = vsel %vm295, %v267, 0
    %vm305 = vcmask 1043456
    %v307 = vsel %vm305, %v290, 0
    %309 = vmatprep.subr.bf16.mxu0 0
    %310 = vmatpush1.bf16.msra.mxu0 %v286
    %311 = vmatprep.subr.bf16.mxu0 0
    %312 = vmatpush1.bf16.msra.mxu0 %v287
    %313 = vmatprep.subr.bf16.mxu0 0
    %314 = vmatpush1.bf16.msra.mxu0 %v288
    %315 = vmatprep.subr.bf16.mxu0 0
    %316 = vmatpush1.bf16.msra.mxu0 %v289
    %317 = vmatprep.subr.bf16.mxu0 0
    %318 = vmatpush1.bf16.msra.mxu0 %v307
    %319 = vmatprep.subr.bf16.mxu0 0
    %320 = vmatpush1.bf16.msra.mxu0 0
    %321 = vmatprep.subr.bf16.mxu0 0
    %322 = vmatpush1.bf16.msra.mxu0 0
    %323 = vmatprep.subr.bf16.mxu0 0
    %324 = vmatpush1.bf16.msra.mxu0 0
    %325 = vmatprep.subr.bf16.mxu0 0
    %326 = vmatpush1.bf16.msra.mxu0 0
    %327 = vmatprep.subr.bf16.mxu0 0
    %328 = vmatpush1.bf16.msra.mxu0 0
    %329 = vmatprep.subr.bf16.mxu0 0
    %330 = vmatpush1.bf16.msra.mxu0 0
    %331 = vmatprep.subr.bf16.mxu0 0
    %332 = vmatpush1.bf16.msra.mxu0 0
    %333 = vmatprep.subr.bf16.mxu0 0
    %334 = vmatpush1.bf16.msra.mxu0 0
    %335 = vmatprep.subr.bf16.mxu0 0
    %336 = vmatpush1.bf16.msra.mxu0 0
    %337 = vmatprep.subr.bf16.mxu0 0
    %338 = vmatpush1.bf16.msra.mxu0 0
    %339 = vmatprep.subr.bf16.mxu0 0
    %340 = vmatpush1.bf16.msra.mxu0 0
    %341 = vmatprep.mubr.bf16.mxu0 0
    %342 = vmatmul.mubr.bf16.gmra.mrb[0].mxu0 %v297
    %v343 = vpop.f32.mrb[0].mxu0
    %v344 = vadd.f32 0.0, %v343
    %v345 = vpop.f32.mrb[0].mxu0
    %v346 = vpop.f32.mrb[0].mxu0
    %v347 = vadd.f32 0.0, %v346
    %v348 = vpop.f32.mrb[0].mxu0
    %349 = vmatprep.mubr.bf16.mxu0 0
    %350 = vmatmul.mubr.bf16.gmra.mrb[0].mxu0 %v300
    %v351 = vpop.f32.mrb[0].mxu0
    %v352 = vadd.f32 0.0, %v351
    %v353 = vpop.f32.mrb[0].mxu0
    %v354 = vpop.f32.mrb[0].mxu0
    %v355 = vadd.f32 0.0, %v354
    %v356 = vpop.f32.mrb[0].mxu0
    %357 = vmatprep.mubr.bf16.mxu0 0
    %358 = vmatmul.mubr.bf16.gmra.mrb[0].mxu0 %v303
    %v359 = vpop.f32.mrb[0].mxu0
    %v360 = vadd.f32 0.0, %v359
    %v361 = vpop.f32.mrb[0].mxu0
    %v362 = vpop.f32.mrb[0].mxu0
    %v363 = vpop.f32.mrb[0].mxu0
    %364 = vdwg.mxu0
    %v366 = vunpack.c.l.b16 %v210
    %v367 = vpack.c.b16 %v366, %v366
    %v377 = vunpack.c.l.b16 %v211
    %v378 = vunpack.c.l.b16 %v212
    %v379 = vunpack.c.l.b16 %v213
    %v380 = vunpack.c.l.b16 %v214
    %v381 = vunpack.c.l.b16 %v215
    %v382 = vunpack.c.l.b16 %v216
    %v383 = vunpack.c.l.b16 %v217
    %v384 = vunpack.c.l.b16 %v218
    %v385 = vunpack.c.l.b16 %v219
    %v386 = vpack.c.b16 %v378, %v377
    %v387 = vpack.c.b16 %v380, %v379
    %v388 = vpack.c.b16 %v382, %v381
    %v389 = vpack.c.b16 %v384, %v383
    %v390 = vpack.c.b16 %v385, %v385
    %v395 = vsel %vm295, %v241, 0
    %v397 = vsel %vm295, %v242, 0
    %v400 = vsel %vm295, %v367, 0
    %v403 = vsel %vm305, %v390, 0
    %405 = vmatprep.subr.bf16.mxu0 0
    %406 = vmatpush1.bf16.msra.mxu0 %v386
    %407 = vmatprep.subr.bf16.mxu0 0
    %408 = vmatpush1.bf16.msra.mxu0 %v387
    %409 = vmatprep.subr.bf16.mxu0 0
    %410 = vmatpush1.bf16.msra.mxu0 %v388
    %411 = vmatprep.subr.bf16.mxu0 0
    %412 = vmatpush1.bf16.msra.mxu0 %v389
    %413 = vmatprep.subr.bf16.mxu0 0
    %414 = vmatpush1.bf16.msra.mxu0 %v403
    %415 = vmatprep.subr.bf16.mxu0 0
    %416 = vmatpush1.bf16.msra.mxu0 0
    %417 = vmatprep.subr.bf16.mxu0 0
    %418 = vmatpush1.bf16.msra.mxu0 0
    %419 = vmatprep.subr.bf16.mxu0 0
    %420 = vmatpush1.bf16.msra.mxu0 0
    %421 = vmatprep.subr.bf16.mxu0 0
    %422 = vmatpush1.bf16.msra.mxu0 0
    %423 = vmatprep.subr.bf16.mxu0 0
    %424 = vmatpush1.bf16.msra.mxu0 0
    %425 = vmatprep.subr.bf16.mxu0 0
    %426 = vmatpush1.bf16.msra.mxu0 0
    %427 = vmatprep.subr.bf16.mxu0 0
    %428 = vmatpush1.bf16.msra.mxu0 0
    %429 = vmatprep.subr.bf16.mxu0 0
    %430 = vmatpush1.bf16.msra.mxu0 0
    %431 = vmatprep.subr.bf16.mxu0 0
    %432 = vmatpush1.bf16.msra.mxu0 0
    %433 = vmatprep.subr.bf16.mxu0 0
    %434 = vmatpush1.bf16.msra.mxu0 0
    %435 = vmatprep.subr.bf16.mxu0 0
    %436 = vmatpush1.bf16.msra.mxu0 0
    %437 = vmatprep.mubr.bf16.mxu0 0
    %438 = vmatmul.mubr.bf16.gmra.mrb[0].mxu0 %v395
    %v439 = vpop.f32.mrb[0].mxu0
    %v440 = vadd.f32 %v344, %v439
    %v441 = vpop.f32.mrb[0].mxu0
    %v442 = vpop.f32.mrb[0].mxu0
    %v443 = vadd.f32 %v347, %v442
    %v444 = vpop.f32.mrb[0].mxu0
    %445 = vmatprep.mubr.bf16.mxu0 0
    %446 = vmatmul.mubr.bf16.gmra.mrb[0].mxu0 %v397
    %v447 = vpop.f32.mrb[0].mxu0
    %v448 = vadd.f32 %v352, %v447
    %v449 = vpop.f32.mrb[0].mxu0
    %v450 = vpop.f32.mrb[0].mxu0
    %v451 = vadd.f32 %v355, %v450
    %v452 = vpop.f32.mrb[0].mxu0
    %453 = vmatprep.mubr.bf16.mxu0 0
    %454 = vmatmul.mubr.bf16.gmra.mrb[0].mxu0 %v400
    %v455 = vpop.f32.mrb[0].mxu0
    %v456 = vadd.f32 %v360, %v455
    %v457 = vpop.f32.mrb[0].mxu0
    %v458 = vpop.f32.mrb[0].mxu0
    %v459 = vpop.f32.mrb[0].mxu0
    %460 = vdwg.mxu0
    %v461 = vld [vmem:[#allocation2] sm:$0xe]
    %s462 = scalar_lea.vmem %s1, 72
    %v463 = vld [vmem:[%s462] sm:$0xf]
    %v464 = vld [vmem:[%s462 + $0x4] sm:$0xf]
    %v465 = vld [vmem:[%s462 + $0x8] sm:$0xf]
    %v466 = vld [vmem:[%s462 + $0xc] sm:$0xf]
    %v467 = vld [vmem:[%s462 + $0x10] sm:$0xf]
    %v468 = vld [vmem:[%s462 + $0x14] sm:$0xf]
    %v469 = vld [vmem:[%s462 + $0x18] sm:$0xf]
    %v470 = vld [vmem:[%s462 + $0x1c] sm:$0xf]
    %v471 = vld [vmem:[%s462 + $0x20] sm:$0xf]
    %v473 = vunpack.c.l.b16 %v461
    %v474 = vpack.c.b16 %v237, %v473
    %vm475 = vcmask 1046528
    %v476 = vrot.slane %v474, 1
    %v477 = vrot.slane %v242, 1
    %v478 = vsel %vm475, %v476, %v477
    %v479 = vrot.slane %v243, 1
    %v480 = vsel %vm475, %v477, %v479
    %v490 = vunpack.c.l.b16 %v463
    %v491 = vunpack.c.l.b16 %v464
    %v492 = vunpack.c.l.b16 %v465
    %v493 = vunpack.c.l.b16 %v466
    %v494 = vunpack.c.l.b16 %v467
    %v495 = vunpack.c.l.b16 %v468
    %v496 = vunpack.c.l.b16 %v469
    %v497 = vunpack.c.l.b16 %v470
    %v498 = vunpack.c.l.b16 %v471
    %v499 = vpack.c.b16 %v491, %v490
    %v500 = vpack.c.b16 %v493, %v492
    %v501 = vpack.c.b16 %v495, %v494
    %v502 = vpack.c.b16 %v497, %v496
    %v503 = vpack.c.b16 %v498, %v498
    %v509 = vsel %vm295, %v478, 0
    %v512 = vsel %vm295, %v480, 0
    %v515 = vsel %vm295, %v479, 0
    %v518 = vsel %vm305, %v503, 0
    %520 = vmatprep.subr.bf16.mxu0 0
    %521 = vmatpush1.bf16.msra.mxu0 %v499
    %522 = vmatprep.subr.bf16.mxu0 0
    %523 = vmatpush1.bf16.msra.mxu0 %v500
    %524 = vmatprep.subr.bf16.mxu0 0
    %525 = vmatpush1.bf16.msra.mxu0 %v501
    %526 = vmatprep.subr.bf16.mxu0 0
    %527 = vmatpush1.bf16.msra.mxu0 %v502
    %528 = vmatprep.subr.bf16.mxu0 0
    %529 = vmatpush1.bf16.msra.mxu0 %v518
    %530 = vmatprep.subr.bf16.mxu0 0
    %531 = vmatpush1.bf16.msra.mxu0 0
    %532 = vmatprep.subr.bf16.mxu0 0
    %533 = vmatpush1.bf16.msra.mxu0 0
    %534 = vmatprep.subr.bf16.mxu0 0
    %535 = vmatpush1.bf16.msra.mxu0 0
    %536 = vmatprep.subr.bf16.mxu0 0
    %537 = vmatpush1.bf16.msra.mxu0 0
    %538 = vmatprep.subr.bf16.mxu0 0
    %539 = vmatpush1.bf16.msra.mxu0 0
    %540 = vmatprep.subr.bf16.mxu0 0
    %541 = vmatpush1.bf16.msra.mxu0 0
    %542 = vmatprep.subr.bf16.mxu0 0
    %543 = vmatpush1.bf16.msra.mxu0 0
    %544 = vmatprep.subr.bf16.mxu0 0
    %545 = vmatpush1.bf16.msra.mxu0 0
    %546 = vmatprep.subr.bf16.mxu0 0
    %547 = vmatpush1.bf16.msra.mxu0 0
    %548 = vmatprep.subr.bf16.mxu0 0
    %549 = vmatpush1.bf16.msra.mxu0 0
    %550 = vmatprep.subr.bf16.mxu0 0
    %551 = vmatpush1.bf16.msra.mxu0 0
    %552 = vmatprep.mubr.bf16.mxu0 0
    %553 = vmatmul.mubr.bf16.gmra.mrb[0].mxu0 %v509
    %v554 = vpop.f32.mrb[0].mxu0
    %v555 = vadd.f32 0.0, %v554
    %v556 = vpop.f32.mrb[0].mxu0
    %v557 = vpop.f32.mrb[0].mxu0
    %v558 = vadd.f32 0.0, %v557
    %v559 = vpop.f32.mrb[0].mxu0
    %560 = vmatprep.mubr.bf16.mxu0 0
    %561 = vmatmul.mubr.bf16.gmra.mrb[0].mxu0 %v512
    %v562 = vpop.f32.mrb[0].mxu0
    %v563 = vadd.f32 0.0, %v562
    %v564 = vpop.f32.mrb[0].mxu0
    %v565 = vpop.f32.mrb[0].mxu0
    %v566 = vadd.f32 0.0, %v565
    %v567 = vpop.f32.mrb[0].mxu0
    %568 = vmatprep.mubr.bf16.mxu0 0
    %569 = vmatmul.mubr.bf16.gmra.mrb[0].mxu0 %v515
    %v570 = vpop.f32.mrb[0].mxu0
    %v571 = vadd.f32 0.0, %v570
    %v572 = vpop.f32.mrb[0].mxu0
    %v573 = vpop.f32.mrb[0].mxu0
    %v574 = vpop.f32.mrb[0].mxu0
    %575 = vdwg.mxu0
    %v576 = vadd.f32 %v440, %v555
    %v577 = vadd.f32 %v443, %v558
    %v578 = vadd.f32 %v448, %v563
    %v579 = vadd.f32 %v451, %v566
    %v580 = vadd.f32 %v456, %v571
    %582 = vset.pattern.permute.xlu0 0
    %583 = vperm.xlu0 %582, %v68
    %v584 = vpop.permute.xlu0 %583
    %587 = vset.pattern.permute.xlu0 0
    %588 = vperm.xlu0 %587, %v69
    %v589 = vpop.permute.xlu0 %588
    %592 = vset.pattern.permute.xlu0 0
    %593 = vperm.xlu0 %592, %v70
    %v594 = vpop.permute.xlu0 %593
    %597 = vset.pattern.permute.xlu0 0
    %598 = vperm.xlu0 %597, %v71
    %v599 = vpop.permute.xlu0 %598
    %602 = vset.pattern.permute.xlu0 0
    %603 = vperm.xlu0 %602, %v72
    %v604 = vpop.permute.xlu0 %603
    %v606 = vmul.f32 %v576, %v584
    %v607 = vmul.f32 %v577, %v589
    %v608 = vmul.f32 %v578, %v594
    %v609 = vmul.f32 %v579, %v599
    %v610 = vmul.f32 %v580, %v604
    %v611 = vadd.f32 %v606, %v607
    %v612 = vadd.f32 %v611, %v608
    %v613 = vadd.f32 %v612, %v609
    %vm614 = vcmask 1041408
    %v615 = vsel %vm614, %v610, 0.0
    %v616 = vadd.f32 %v613, %v615
    %v617 = vrot.slane %v616, 4
    %v618 = vadd.f32 %v616, %v617
    %v619 = vrot.slane %v618, 2
    %v620 = vadd.f32 %v618, %v619
    %v621 = vrot.slane %v620, 1
    %v622 = vadd.f32 %v620, %v621
    %623 = vmatprep.subr.mxu0 0.0
    %624 = vmatpush1.msra.mxu0 %v51
    %625 = vmatprep.subr.mxu0 0.0
    %626 = vmatpush1.msra.mxu0 %v52
    %627 = vmatprep.subr.mxu0 0.0
    %628 = vmatpush1.msra.mxu0 %v53
    %629 = vmatprep.subr.mxu0 0.0
    %630 = vmatpush1.msra.mxu0 %v54
    %631 = vmatprep.subr.mxu0 0.0
    %632 = vmatpush1.msra.mxu0 %v55
    %633 = vmatprep.subr.mxu0 0.0
    %634 = vmatpush1.msra.mxu0 %v56
    %635 = vmatprep.subr.mxu0 0.0
    %636 = vmatpush1.msra.mxu0 %v57
    %637 = vmatprep.subr.mxu0 0.0
    %638 = vmatpush1.msra.mxu0 %v58
    %639 = vmatprep.subr.mxu0 0.0
    %640 = vmatpush1.msra.mxu0 %v59
    %641 = vmatprep.subr.mxu0 0.0
    %642 = vmatpush1.msra.mxu0 %v60
    %643 = vmatprep.subr.mxu0 0.0
    %644 = vmatpush1.msra.mxu0 %v61
    %645 = vmatprep.subr.mxu0 0.0
    %646 = vmatpush1.msra.mxu0 %v62
    %647 = vmatprep.subr.mxu0 0.0
    %648 = vmatpush1.msra.mxu0 %v63
    %649 = vmatprep.subr.mxu0 0.0
    %650 = vmatpush1.msra.mxu0 %v64
    %651 = vmatprep.subr.mxu0 0.0
    %652 = vmatpush1.msra.mxu0 %v65
    %653 = vmatprep.subr.mxu0 0.0
    %654 = vmatpush1.msra.mxu0 %v66
    %655 = vmatprep.subr.mxu0 0.0
    %656 = vmatpush1.msra.mxu0 0.0
    %657 = vmatprep.subr.mxu0 0.0
    %658 = vmatpush1.msra.mxu0 0.0
    %659 = vmatprep.subr.mxu0 0.0
    %660 = vmatpush1.msra.mxu0 0.0
    %661 = vmatprep.subr.mxu0 0.0
    %662 = vmatpush1.msra.mxu0 0.0
    %663 = vmatprep.subr.mxu0 0.0
    %664 = vmatpush1.msra.mxu0 0.0
    %665 = vmatprep.subr.mxu0 0.0
    %666 = vmatpush1.msra.mxu0 0.0
    %667 = vmatprep.subr.mxu0 0.0
    %668 = vmatpush1.msra.mxu0 0.0
    %669 = vmatprep.subr.mxu0 0.0
    %670 = vmatpush1.msra.mxu0 0.0
    %671 = vmatprep.subr.mxu0 0.0
    %672 = vmatpush1.msra.mxu0 0.0
    %673 = vmatprep.subr.mxu0 0.0
    %674 = vmatpush1.msra.mxu0 0.0
    %675 = vmatprep.subr.mxu0 0.0
    %676 = vmatpush1.msra.mxu0 0.0
    %677 = vmatprep.subr.mxu0 0.0
    %678 = vmatpush1.msra.mxu0 0.0
    %679 = vmatprep.subr.mxu0 0.0
    %680 = vmatpush1.msra.mxu0 0.0
    %681 = vmatprep.subr.mxu0 0.0
    %682 = vmatpush1.msra.mxu0 0.0
    %683 = vmatprep.subr.mxu0 0.0
    %684 = vmatpush1.msra.mxu0 0.0
    %685 = vmatprep.subr.mxu0 0.0
    %686 = vmatpush1.msra.mxu0 0.0
    %687 = vmatprep.mubr.f32.mxu0 0.0
    %688 = vmatmul.mubr.f32.gmra.mrb[0].mxu0 %v622
    %v689 = vpop.f32.mrb[0].mxu0
    %v690 = vadd.f32 0.0, %v689
    %v691 = vpop.f32.mrb[0].mxu0
    %692 = vdwg.mxu0
    %v693 = vmul.f32 %v690, 0.001953125
    %vm694 = vcmask 64512
    %v696 = vsel %vm694, %v693, 0
    %698 = vmatprep.subr.mxu0 0.0
    %699 = vmatpush1.msra.mxu0 %v67
    %700 = vmatprep.subr.mxu0 0.0
    %701 = vmatpush1.msra.mxu0 0.0
    %702 = vmatprep.subr.mxu0 0.0
    %703 = vmatpush1.msra.mxu0 0.0
    %704 = vmatprep.subr.mxu0 0.0
    %705 = vmatpush1.msra.mxu0 0.0
    %706 = vmatprep.subr.mxu0 0.0
    %707 = vmatpush1.msra.mxu0 0.0
    %708 = vmatprep.subr.mxu0 0.0
    %709 = vmatpush1.msra.mxu0 0.0
    %710 = vmatprep.subr.mxu0 0.0
    %711 = vmatpush1.msra.mxu0 0.0
    %712 = vmatprep.subr.mxu0 0.0
    %713 = vmatpush1.msra.mxu0 0.0
    %714 = vmatprep.subr.mxu0 0.0
    %715 = vmatpush1.msra.mxu0 0.0
    %716 = vmatprep.subr.mxu0 0.0
    %717 = vmatpush1.msra.mxu0 0.0
    %718 = vmatprep.subr.mxu0 0.0
    %719 = vmatpush1.msra.mxu0 0.0
    %720 = vmatprep.subr.mxu0 0.0
    %721 = vmatpush1.msra.mxu0 0.0
    %722 = vmatprep.subr.mxu0 0.0
    %723 = vmatpush1.msra.mxu0 0.0
    %724 = vmatprep.subr.mxu0 0.0
    %725 = vmatpush1.msra.mxu0 0.0
    %726 = vmatprep.subr.mxu0 0.0
    %727 = vmatpush1.msra.mxu0 0.0
    %728 = vmatprep.subr.mxu0 0.0
    %729 = vmatpush1.msra.mxu0 0.0
    %730 = vmatprep.subr.mxu0 0.0
    %731 = vmatpush1.msra.mxu0 0.0
    %732 = vmatprep.subr.mxu0 0.0
    %733 = vmatpush1.msra.mxu0 0.0
    %734 = vmatprep.subr.mxu0 0.0
    %735 = vmatpush1.msra.mxu0 0.0
    %736 = vmatprep.subr.mxu0 0.0
    %737 = vmatpush1.msra.mxu0 0.0
    %738 = vmatprep.subr.mxu0 0.0
    %739 = vmatpush1.msra.mxu0 0.0
    %740 = vmatprep.subr.mxu0 0.0
    %741 = vmatpush1.msra.mxu0 0.0
    %742 = vmatprep.subr.mxu0 0.0
    %743 = vmatpush1.msra.mxu0 0.0
    %744 = vmatprep.subr.mxu0 0.0
    %745 = vmatpush1.msra.mxu0 0.0
    %746 = vmatprep.subr.mxu0 0.0
    %747 = vmatpush1.msra.mxu0 0.0
    %748 = vmatprep.subr.mxu0 0.0
    %749 = vmatpush1.msra.mxu0 0.0
    %750 = vmatprep.subr.mxu0 0.0
    %751 = vmatpush1.msra.mxu0 0.0
    %752 = vmatprep.subr.mxu0 0.0
    %753 = vmatpush1.msra.mxu0 0.0
    %754 = vmatprep.subr.mxu0 0.0
    %755 = vmatpush1.msra.mxu0 0.0
    %756 = vmatprep.subr.mxu0 0.0
    %757 = vmatpush1.msra.mxu0 0.0
    %758 = vmatprep.subr.mxu0 0.0
    %759 = vmatpush1.msra.mxu0 0.0
    %760 = vmatprep.subr.mxu0 0.0
    %761 = vmatpush1.msra.mxu0 0.0
    %762 = vmatprep.mubr.f32.mxu0 0.0
    %763 = vmatmul.mubr.f32.gmra.mrb[0].mxu0 %v696
    %v764 = vpop.f32.mrb[0].mxu0
    %v765 = vadd.f32 0.0, %v764
    %v766 = vpop.f32.mrb[0].mxu0
    %767 = vdwg.mxu0
    %v768 = vlaneseq
    %v769 = vshrl.u32 %v768, 7
    %v770 = vsub.s32 0, %v769
    %v771 = vrot.slane %v765, %v770
    %v772 = vsub.f32 %v576, %v771
    %v773 = vsub.f32 %v577, %v771
    %v774 = vsub.f32 %v578, %v771
    %v775 = vsub.f32 %v579, %v771
    %v776 = vsub.f32 %v580, %v771
    %v777 = vmul.f32 %v772, %v584
    %v778 = vmul.f32 %v773, %v589
    %v779 = vmul.f32 %v774, %v594
    %v780 = vmul.f32 %v775, %v599
    %v781 = vmul.f32 %v776, %v604
    %v782 = vmul.f32 %v777, %v777
    %v783 = vmul.f32 %v778, %v778
    %v784 = vmul.f32 %v779, %v779
    %v785 = vmul.f32 %v780, %v780
    %v786 = vmul.f32 %v781, %v781
    %v787 = vadd.f32 %v782, %v783
    %v788 = vadd.f32 %v787, %v784
    %v789 = vadd.f32 %v788, %v785
    %v790 = vsel %vm614, %v786, 0.0
    %v791 = vadd.f32 %v789, %v790
    %v792 = vrot.slane %v791, 4
    %v793 = vadd.f32 %v791, %v792
    %v794 = vrot.slane %v793, 2
    %v795 = vadd.f32 %v793, %v794
    %v796 = vrot.slane %v795, 1
    %v797 = vadd.f32 %v795, %v796
    %798 = vmatprep.subr.mxu0 0.0
    %799 = vmatpush1.msra.mxu0 %v51
    %800 = vmatprep.subr.mxu0 0.0
    %801 = vmatpush1.msra.mxu0 %v52
    %802 = vmatprep.subr.mxu0 0.0
    %803 = vmatpush1.msra.mxu0 %v53
    %804 = vmatprep.subr.mxu0 0.0
    %805 = vmatpush1.msra.mxu0 %v54
    %806 = vmatprep.subr.mxu0 0.0
    %807 = vmatpush1.msra.mxu0 %v55
    %808 = vmatprep.subr.mxu0 0.0
    %809 = vmatpush1.msra.mxu0 %v56
    %810 = vmatprep.subr.mxu0 0.0
    %811 = vmatpush1.msra.mxu0 %v57
    %812 = vmatprep.subr.mxu0 0.0
    %813 = vmatpush1.msra.mxu0 %v58
    %814 = vmatprep.subr.mxu0 0.0
    %815 = vmatpush1.msra.mxu0 %v59
    %816 = vmatprep.subr.mxu0 0.0
    %817 = vmatpush1.msra.mxu0 %v60
    %818 = vmatprep.subr.mxu0 0.0
    %819 = vmatpush1.msra.mxu0 %v61
    %820 = vmatprep.subr.mxu0 0.0
    %821 = vmatpush1.msra.mxu0 %v62
    %822 = vmatprep.subr.mxu0 0.0
    %823 = vmatpush1.msra.mxu0 %v63
    %824 = vmatprep.subr.mxu0 0.0
    %825 = vmatpush1.msra.mxu0 %v64
    %826 = vmatprep.subr.mxu0 0.0
    %827 = vmatpush1.msra.mxu0 %v65
    %828 = vmatprep.subr.mxu0 0.0
    %829 = vmatpush1.msra.mxu0 %v66
    %830 = vmatprep.subr.mxu0 0.0
    %831 = vmatpush1.msra.mxu0 0.0
    %832 = vmatprep.subr.mxu0 0.0
    %833 = vmatpush1.msra.mxu0 0.0
    %834 = vmatprep.subr.mxu0 0.0
    %835 = vmatpush1.msra.mxu0 0.0
    %836 = vmatprep.subr.mxu0 0.0
    %837 = vmatpush1.msra.mxu0 0.0
    %838 = vmatprep.subr.mxu0 0.0
    %839 = vmatpush1.msra.mxu0 0.0
    %840 = vmatprep.subr.mxu0 0.0
    %841 = vmatpush1.msra.mxu0 0.0
    %842 = vmatprep.subr.mxu0 0.0
    %843 = vmatpush1.msra.mxu0 0.0
    %844 = vmatprep.subr.mxu0 0.0
    %845 = vmatpush1.msra.mxu0 0.0
    %846 = vmatprep.subr.mxu0 0.0
    %847 = vmatpush1.msra.mxu0 0.0
    %848 = vmatprep.subr.mxu0 0.0
    %849 = vmatpush1.msra.mxu0 0.0
    %850 = vmatprep.subr.mxu0 0.0
    %851 = vmatpush1.msra.mxu0 0.0
    %852 = vmatprep.subr.mxu0 0.0
    %853 = vmatpush1.msra.mxu0 0.0
    %854 = vmatprep.subr.mxu0 0.0
    %855 = vmatpush1.msra.mxu0 0.0
    %856 = vmatprep.subr.mxu0 0.0
    %857 = vmatpush1.msra.mxu0 0.0
    %858 = vmatprep.subr.mxu0 0.0
    %859 = vmatpush1.msra.mxu0 0.0
    %860 = vmatprep.subr.mxu0 0.0
    %861 = vmatpush1.msra.mxu0 0.0
    %862 = vmatprep.mubr.f32.mxu0 0.0
    %863 = vmatmul.mubr.f32.gmra.mrb[0].mxu0 %v797
    %v864 = vpop.f32.mrb[0].mxu0
    %v865 = vadd.f32 0.0, %v864
    %v866 = vpop.f32.mrb[0].mxu0
    %867 = vdwg.mxu0
    %v868 = vmul.f32 %v865, 0.001953125
    %v869 = vld [vmem:[%s2] sm:$0x1]
    %v870 = vadd.f32 %v868, 1e-05
    %v871 = vrsqrt.pop %v870
    %v872 = vmul.f32 %v869, %v871
    %v874 = vsel %vm694, %v872, 0
    %876 = vmatprep.subr.mxu0 0.0
    %877 = vmatpush1.msra.mxu0 %v67
    %878 = vmatprep.subr.mxu0 0.0
    %879 = vmatpush1.msra.mxu0 0.0
    %880 = vmatprep.subr.mxu0 0.0
    %881 = vmatpush1.msra.mxu0 0.0
    %882 = vmatprep.subr.mxu0 0.0
    %883 = vmatpush1.msra.mxu0 0.0
    %884 = vmatprep.subr.mxu0 0.0
    %885 = vmatpush1.msra.mxu0 0.0
    %886 = vmatprep.subr.mxu0 0.0
    %887 = vmatpush1.msra.mxu0 0.0
    %888 = vmatprep.subr.mxu0 0.0
    %889 = vmatpush1.msra.mxu0 0.0
    %890 = vmatprep.subr.mxu0 0.0
    %891 = vmatpush1.msra.mxu0 0.0
    %892 = vmatprep.subr.mxu0 0.0
    %893 = vmatpush1.msra.mxu0 0.0
    %894 = vmatprep.subr.mxu0 0.0
    %895 = vmatpush1.msra.mxu0 0.0
    %896 = vmatprep.subr.mxu0 0.0
    %897 = vmatpush1.msra.mxu0 0.0
    %898 = vmatprep.subr.mxu0 0.0
    %899 = vmatpush1.msra.mxu0 0.0
    %900 = vmatprep.subr.mxu0 0.0
    %901 = vmatpush1.msra.mxu0 0.0
    %902 = vmatprep.subr.mxu0 0.0
    %903 = vmatpush1.msra.mxu0 0.0
    %904 = vmatprep.subr.mxu0 0.0
    %905 = vmatpush1.msra.mxu0 0.0
    %906 = vmatprep.subr.mxu0 0.0
    %907 = vmatpush1.msra.mxu0 0.0
    %908 = vmatprep.subr.mxu0 0.0
    %909 = vmatpush1.msra.mxu0 0.0
    %910 = vmatprep.subr.mxu0 0.0
    %911 = vmatpush1.msra.mxu0 0.0
    %912 = vmatprep.subr.mxu0 0.0
    %913 = vmatpush1.msra.mxu0 0.0
    %914 = vmatprep.subr.mxu0 0.0
    %915 = vmatpush1.msra.mxu0 0.0
    %916 = vmatprep.subr.mxu0 0.0
    %917 = vmatpush1.msra.mxu0 0.0
    %918 = vmatprep.subr.mxu0 0.0
    %919 = vmatpush1.msra.mxu0 0.0
    %920 = vmatprep.subr.mxu0 0.0
    %921 = vmatpush1.msra.mxu0 0.0
    %922 = vmatprep.subr.mxu0 0.0
    %923 = vmatpush1.msra.mxu0 0.0
    %924 = vmatprep.subr.mxu0 0.0
    %925 = vmatpush1.msra.mxu0 0.0
    %926 = vmatprep.subr.mxu0 0.0
    %927 = vmatpush1.msra.mxu0 0.0
    %928 = vmatprep.subr.mxu0 0.0
    %929 = vmatpush1.msra.mxu0 0.0
    %930 = vmatprep.subr.mxu0 0.0
    %931 = vmatpush1.msra.mxu0 0.0
    %932 = vmatprep.subr.mxu0 0.0
    %933 = vmatpush1.msra.mxu0 0.0
    %934 = vmatprep.subr.mxu0 0.0
    %935 = vmatpush1.msra.mxu0 0.0
    %936 = vmatprep.subr.mxu0 0.0
    %937 = vmatpush1.msra.mxu0 0.0
    %938 = vmatprep.subr.mxu0 0.0
    %939 = vmatpush1.msra.mxu0 0.0
    %940 = vmatprep.mubr.f32.mxu0 0.0
    %941 = vmatmul.mubr.f32.gmra.mrb[0].mxu0 %v874
    %v942 = vpop.f32.mrb[0].mxu0
    %v943 = vadd.f32 0.0, %v942
    %v944 = vpop.f32.mrb[0].mxu0
    %945 = vdwg.mxu0
    %v946 = vld [vmem:[%s3] sm:$0x1]
    %v948 = vsel %vm694, %v946, 0
    %950 = vmatprep.subr.mxu0 0.0
    %951 = vmatpush1.msra.mxu0 %v67
    %952 = vmatprep.subr.mxu0 0.0
    %953 = vmatpush1.msra.mxu0 0.0
    %954 = vmatprep.subr.mxu0 0.0
    %955 = vmatpush1.msra.mxu0 0.0
    %956 = vmatprep.subr.mxu0 0.0
    %957 = vmatpush1.msra.mxu0 0.0
    %958 = vmatprep.subr.mxu0 0.0
    %959 = vmatpush1.msra.mxu0 0.0
    %960 = vmatprep.subr.mxu0 0.0
    %961 = vmatpush1.msra.mxu0 0.0
    %962 = vmatprep.subr.mxu0 0.0
    %963 = vmatpush1.msra.mxu0 0.0
    %964 = vmatprep.subr.mxu0 0.0
    %965 = vmatpush1.msra.mxu0 0.0
    %966 = vmatprep.subr.mxu0 0.0
    %967 = vmatpush1.msra.mxu0 0.0
    %968 = vmatprep.subr.mxu0 0.0
    %969 = vmatpush1.msra.mxu0 0.0
    %970 = vmatprep.subr.mxu0 0.0
    %971 = vmatpush1.msra.mxu0 0.0
    %972 = vmatprep.subr.mxu0 0.0
    %973 = vmatpush1.msra.mxu0 0.0
    %974 = vmatprep.subr.mxu0 0.0
    %975 = vmatpush1.msra.mxu0 0.0
    %976 = vmatprep.subr.mxu0 0.0
    %977 = vmatpush1.msra.mxu0 0.0
    %978 = vmatprep.subr.mxu0 0.0
    %979 = vmatpush1.msra.mxu0 0.0
    %980 = vmatprep.subr.mxu0 0.0
    %981 = vmatpush1.msra.mxu0 0.0
    %982 = vmatprep.subr.mxu0 0.0
    %983 = vmatpush1.msra.mxu0 0.0
    %984 = vmatprep.subr.mxu0 0.0
    %985 = vmatpush1.msra.mxu0 0.0
    %986 = vmatprep.subr.mxu0 0.0
    %987 = vmatpush1.msra.mxu0 0.0
    %988 = vmatprep.subr.mxu0 0.0
    %989 = vmatpush1.msra.mxu0 0.0
    %990 = vmatprep.subr.mxu0 0.0
    %991 = vmatpush1.msra.mxu0 0.0
    %992 = vmatprep.subr.mxu0 0.0
    %993 = vmatpush1.msra.mxu0 0.0
    %994 = vmatprep.subr.mxu0 0.0
    %995 = vmatpush1.msra.mxu0 0.0
    %996 = vmatprep.subr.mxu0 0.0
    %997 = vmatpush1.msra.mxu0 0.0
    %998 = vmatprep.subr.mxu0 0.0
    %999 = vmatpush1.msra.mxu0 0.0
    %1000 = vmatprep.subr.mxu0 0.0
    %1001 = vmatpush1.msra.mxu0 0.0
    %1002 = vmatprep.subr.mxu0 0.0
    %1003 = vmatpush1.msra.mxu0 0.0
    %1004 = vmatprep.subr.mxu0 0.0
    %1005 = vmatpush1.msra.mxu0 0.0
    %1006 = vmatprep.subr.mxu0 0.0
    %1007 = vmatpush1.msra.mxu0 0.0
    %1008 = vmatprep.subr.mxu0 0.0
    %1009 = vmatpush1.msra.mxu0 0.0
    %1010 = vmatprep.subr.mxu0 0.0
    %1011 = vmatpush1.msra.mxu0 0.0
    %1012 = vmatprep.subr.mxu0 0.0
    %1013 = vmatpush1.msra.mxu0 0.0
    %1014 = vmatprep.mubr.f32.mxu0 0.0
    %1015 = vmatmul.mubr.f32.gmra.mrb[0].mxu0 %v948
    %v1016 = vpop.f32.mrb[0].mxu0
    %v1017 = vadd.f32 0.0, %v1016
    %v1018 = vpop.f32.mrb[0].mxu0
    %1019 = vdwg.mxu0
    %v1020 = vlaneseq
    %v1021 = vshrl.u32 %v1020, 7
    %v1022 = vsub.s32 0, %v1021
    %v1023 = vrot.slane %v943, %v1022
    %v1024 = vmul.f32 %v777, %v1023
    %v1025 = vmul.f32 %v778, %v1023
    %v1026 = vmul.f32 %v779, %v1023
    %v1027 = vmul.f32 %v780, %v1023
    %v1028 = vmul.f32 %v781, %v1023
    %v1029 = vlaneseq
    %v1030 = vshrl.u32 %v1029, 7
    %v1031 = vsub.s32 0, %v1030
    %v1032 = vrot.slane %v1017, %v1031
    %v1033 = vadd.f32 %v1024, %v1032
    %v1034 = vadd.f32 %v1025, %v1032
    %v1035 = vadd.f32 %v1026, %v1032
    %v1036 = vadd.f32 %v1027, %v1032
    %v1037 = vadd.f32 %v1028, %v1032
    %v1038 = vmax.f32 %v1033, 0.0
    %v1039 = vmax.f32 %v1034, 0.0
    %v1040 = vmax.f32 %v1035, 0.0
    %v1041 = vmax.f32 %v1036, 0.0
    %v1042 = vmax.f32 %v1037, 0.0
    %v1043 = vmul.f32 %v1038, %v584
    %v1044 = vmul.f32 %v1039, %v589
    %v1045 = vmul.f32 %v1040, %v594
    %v1046 = vmul.f32 %v1041, %v599
    %v1047 = vmul.f32 %v1042, %v604
    %vm1048 = vcmask 60416
    %1049 = vst.msk [vmem:[#allocation3] sm:$0xf] %vm1048, 0
    %1050 = vst.msk [vmem:[#allocation3 + $0x8] sm:$0xf] %vm1048, 0
    %1051 = vst.msk [vmem:[#allocation3 + $0x10] sm:$0xf] %vm1048, 0
    %1052 = vst.msk [vmem:[#allocation3 + $0x18] sm:$0xf] %vm1048, 0
    %vm1053 = vcmask 58368
    %1054 = vst.msk [vmem:[#allocation3 + $0x20] sm:$0x3] %vm1053, 0
    %vm1055 = vcmask 126016
    %1056 = vst.msk [vmem:[#allocation3 + $0x4] sm:$0xf] %vm1055, 0
    %1057 = vst.msk [vmem:[#allocation3 + $0xc] sm:$0xf] %vm1055, 0
    %1058 = vst.msk [vmem:[#allocation3 + $0x14] sm:$0xf] %vm1055, 0
    %1059 = vst.msk [vmem:[#allocation3 + $0x1c] sm:$0xf] %vm1055, 0
    %vm1060 = vcmask 123968
    %1061 = vst.msk [vmem:[#allocation3 + $0x24] sm:$0x3] %vm1060, 0
    %vm1062 = vcmask 1040384
    %vm1063 = vmand %vm1062, %vm88
    %vm1064 = vcmask 126980
    %vm1065 = vsmask.f32 4352
    %vm1066 = vmand %vm1064, %vm1065
    %vm1067 = vmor %vm1066, %vm1063
    %v1068 = vld [vmem:[#allocation3] sm:$0x11]
    %v1069 = vsel %vm1067, 0, %v1068
    %1070 = vst [vmem:[#allocation3] sm:$0x11] %v1069
    %vm1071 = vcmask 1041409
    %vm1072 = vmand %vm1071, %vm152
    %vm1073 = vcmask 128005
    %vm1074 = vsmask.f32 7958
    %vm1075 = vmand %vm1073, %vm1074
    %vm1076 = vmor %vm1075, %vm1072
    %v1077 = vld [vmem:[#allocation3 + $0x20] sm:$0x22]
    %v1078 = vsel %vm1076, 0, %v1077
    %1079 = vst [vmem:[#allocation3 + $0x20] sm:$0x22] %v1078
    %v1080 = vpack.c.bf16 %v1044, %v1043
    %v1081 = vpack.c.bf16 %v1046, %v1045
    %v1082 = vpack.c.bf16 %v1047, %v1047
    %v1086 = vunpack.c.l.b16 %v1080
    %v1087 = vunpack.c.h.b16 %v1080
    %v1088 = vunpack.c.l.b16 %v1081
    %v1089 = vunpack.c.h.b16 %v1081
    %v1090 = vunpack.c.l.b16 %v1082
    %v1091 = vpack.c.b16 %v1086, %v1086
    %v1092 = vpack.c.b16 %v1087, %v1087
    %v1093 = vpack.c.b16 %v1088, %v1088
    %v1094 = vpack.c.b16 %v1089, %v1089
    %v1095 = vpack.c.b16 %v1090, %v1090
    %v1097 = vshrl.u32 %v1091, 16
    %v1099 = vrot.slane %v1097, 7
    %v1100 = vshll.u32 %v1091, 16
    %v1102 = vor.u32 %v1099, %v1100
    %v1103 = vrot.slane %v1099, 4
    %v1105 = vshrl.u32 %v1092, 16
    %v1107 = vrot.slane %v1105, 7
    %v1108 = vshll.u32 %v1092, 16
    %v1110 = vor.u32 %v1107, %v1108
    %v1111 = vsel %vm107, %v1103, %v1110
    %v1112 = vrot.slane %v1107, 4
    %v1114 = vshrl.u32 %v1093, 16
    %v1116 = vrot.slane %v1114, 7
    %v1117 = vshll.u32 %v1093, 16
    %v1119 = vor.u32 %v1116, %v1117
    %v1120 = vsel %vm107, %v1112, %v1119
    %v1121 = vrot.slane %v1116, 4
    %v1123 = vshrl.u32 %v1094, 16
    %v1125 = vrot.slane %v1123, 7
    %v1126 = vshll.u32 %v1094, 16
    %v1128 = vor.u32 %v1125, %v1126
    %v1129 = vsel %vm107, %v1121, %v1128
    %v1130 = vrot.slane %v1125, 4
    %v1132 = vshrl.u32 %v1095, 16
    %v1134 = vrot.slane %v1132, 7
    %v1135 = vshll.u32 %v1095, 16
    %v1137 = vor.u32 %v1134, %v1135
    %v1138 = vsel %vm107, %v1130, %v1137
    %1139 = vrot.lane.b32.xlu0 %v1102, 8
    %v1140 = vpop.permute.xlu0 %1139
    %1141 = vrot.lane.b32.xlu0 %v1111, 8
    %v1142 = vpop.permute.xlu0 %1141
    %1143 = vrot.lane.b32.xlu0 %v1120, 8
    %v1144 = vpop.permute.xlu0 %1143
    %1145 = vrot.lane.b32.xlu0 %v1129, 8
    %v1146 = vpop.permute.xlu0 %1145
    %1147 = vrot.lane.b32.xlu0 %v1138, 8
    %v1148 = vpop.permute.xlu0 %1147
    %v1149 = vrot.slane %v1140, 4
    %v1150 = vrot.slane %v1142, 4
    %v1151 = vrot.slane %v1144, 4
    %v1152 = vrot.slane %v1146, 4
    %v1153 = vrot.slane %v1148, 4
    %vm1154 = vcmask 64512
    %v1155 = vsel %vm1154, %v1149, %v1140
    %v1156 = vsel %vm1154, %v1150, %v1142
    %v1157 = vsel %vm1154, %v1151, %v1144
    %v1158 = vsel %vm1154, %v1152, %v1146
    %v1159 = vsel %vm1154, %v1153, %v1148
    %vm1165 = vcmask 1043520
    %vm1166 = vmand %vm1165, %vm93
    %vm1167 = vcmask 64516
    %vm1168 = vsmask.f32 7954
    %vm1169 = vmand %vm1167, %vm1168
    %vm1170 = vmor %vm1169, %vm1166
    %v1171 = vld [vmem:[#allocation3] sm:$0xff]
    %v1172 = vsel %vm1170, %v1155, %v1171
    %1173 = vst [vmem:[#allocation3] sm:$0xff] %v1172
    %vm1174 = vcmask 1043520
    %vm1175 = vcmask 64516
    %vm1176 = vmor %vm1175, %vm1174
    %1177 = vst.msk [vmem:[#allocation3 + $0x8] sm:$0xff] %vm1176, %v1156
    %1178 = vst.msk [vmem:[#allocation3 + $0x10] sm:$0xff] %vm1176, %v1157
    %1179 = vst.msk [vmem:[#allocation3 + $0x18] sm:$0xff] %vm1176, %v1158
    %vm1180 = vcmask 1041472
    %vm1181 = vmand %vm1180, %vm147
    %vm1182 = vcmask 62468
    %vm1183 = vsmask.f32 5376
    %vm1184 = vmand %vm1182, %vm1183
    %vm1185 = vmor %vm1184, %vm1181
    %v1186 = vld [vmem:[#allocation3 + $0x20] sm:$0x33]
    %v1187 = vsel %vm1185, %v1159, %v1186
    %1188 = vst [vmem:[#allocation3 + $0x20] sm:$0x33] %v1187
    %v1189 = vld [vmem:[#allocation3] sm:$0xff]
    %v1190 = vld [vmem:[#allocation3 + $0x8] sm:$0xff]
    %v1191 = vld [vmem:[#allocation3 + $0x10] sm:$0xff]
    %v1192 = vld [vmem:[#allocation3 + $0x18] sm:$0xff]
    %v1193 = vld [vmem:[#allocation3 + $0x20] sm:$0x11]
    %v1194 = vld [vmem:[#allocation4] sm:$0xf]
    %v1195 = vld [vmem:[#allocation4 + $0x4] sm:$0xf]
    %v1196 = vld [vmem:[#allocation4 + $0x8] sm:$0xf]
    %v1197 = vld [vmem:[#allocation4 + $0xc] sm:$0xf]
    %v1198 = vld [vmem:[#allocation4 + $0x10] sm:$0xf]
    %v1199 = vld [vmem:[#allocation4 + $0x14] sm:$0xf]
    %v1200 = vld [vmem:[#allocation4 + $0x18] sm:$0xf]
    %v1201 = vld [vmem:[#allocation4 + $0x1c] sm:$0xf]
    %v1202 = vld [vmem:[#allocation4 + $0x20] sm:$0xf]
    %v1203 = vld [vmem:[#allocation4 + $0x24] sm:$0xf]
    %v1204 = vld [vmem:[#allocation4 + $0x28] sm:$0xf]
    %v1205 = vld [vmem:[#allocation4 + $0x2c] sm:$0xf]
    %v1206 = vld [vmem:[#allocation4 + $0x30] sm:$0xf]
    %v1207 = vld [vmem:[#allocation4 + $0x34] sm:$0xf]
    %v1208 = vld [vmem:[#allocation4 + $0x38] sm:$0xf]
    %v1209 = vld [vmem:[#allocation4 + $0x3c] sm:$0xf]
    %v1210 = vld [vmem:[#allocation4 + $0x40] sm:$0xf]
    %v1211 = vld [vmem:[#allocation4 + $0x44] sm:$0xf]
    %v1212 = vld [vmem:[#allocation3 + $0x20] sm:$0x33]
    %s1213 = scalar_lea.vmem [#allocation4], 72
    %v1214 = vld [vmem:[%s1213] sm:$0xf]
    %v1215 = vld [vmem:[%s1213 + $0x4] sm:$0xf]
    %v1216 = vld [vmem:[%s1213 + $0x8] sm:$0xf]
    %v1217 = vld [vmem:[%s1213 + $0xc] sm:$0xf]
    %v1218 = vld [vmem:[%s1213 + $0x10] sm:$0xf]
    %v1219 = vld [vmem:[%s1213 + $0x14] sm:$0xf]
    %v1220 = vld [vmem:[%s1213 + $0x18] sm:$0xf]
    %v1221 = vld [vmem:[%s1213 + $0x1c] sm:$0xf]
    %v1222 = vld [vmem:[%s1213 + $0x20] sm:$0xf]
    %v1223 = vld [vmem:[%s1213 + $0x24] sm:$0xf]
    %v1224 = vld [vmem:[%s1213 + $0x28] sm:$0xf]
    %v1225 = vld [vmem:[%s1213 + $0x2c] sm:$0xf]
    %v1226 = vld [vmem:[%s1213 + $0x30] sm:$0xf]
    %v1227 = vld [vmem:[%s1213 + $0x34] sm:$0xf]
    %v1228 = vld [vmem:[%s1213 + $0x38] sm:$0xf]
    %v1229 = vld [vmem:[%s1213 + $0x3c] sm:$0xf]
    %v1230 = vld [vmem:[%s1213 + $0x40] sm:$0xf]
    %v1231 = vld [vmem:[%s1213 + $0x44] sm:$0xf]
    %v1237 = vunpack.c.l.b16 %v1189
    %v1238 = vunpack.c.h.b16 %v1189
    %v1239 = vunpack.c.l.b16 %v1190
    %v1240 = vunpack.c.h.b16 %v1190
    %v1241 = vunpack.c.l.b16 %v1191
    %v1242 = vunpack.c.h.b16 %v1191
    %v1243 = vunpack.c.l.b16 %v1192
    %v1244 = vunpack.c.h.b16 %v1192
    %v1245 = vunpack.c.l.b16 %v1212
    %v1246 = vunpack.c.h.b16 %v1212
    %v1247 = vpack.c.b16 %v1239, %v1237
    %v1248 = vpack.c.b16 %v1240, %v1238
    %v1249 = vpack.c.b16 %v1243, %v1241
    %v1250 = vpack.c.b16 %v1244, %v1242
    %v1251 = vpack.c.b16 %v1245, %v1245
    %v1252 = vpack.c.b16 %v1246, %v1246
    %v1254 = vshrl.u32 %v1247, 16
    %v1256 = vshll.u32 %v1247, 16
    %v1258 = vrot.slane %v1256, 1
    %v1259 = vor.u32 %v1254, %v1258
    %v1261 = vshll.u32 %v1249, 16
    %v1263 = vrot.slane %v1261, 1
    %v1264 = vsel %vm244, %v1259, %v1263
    %v1266 = vshrl.u32 %v1248, 16
    %v1268 = vshll.u32 %v1248, 16
    %v1270 = vrot.slane %v1268, 1
    %v1271 = vor.u32 %v1266, %v1270
    %v1273 = vshll.u32 %v1250, 16
    %v1275 = vrot.slane %v1273, 1
    %v1276 = vsel %vm244, %v1271, %v1275
    %v1277 = vshrl.u32 %v1249, 16
    %v1279 = vor.u32 %v1277, %v1263
    %v1281 = vshll.u32 %v1251, 16
    %v1283 = vrot.slane %v1281, 1
    %v1284 = vsel %vm244, %v1279, %v1283
    %v1285 = vshrl.u32 %v1250, 16
    %v1287 = vor.u32 %v1285, %v1275
    %v1289 = vshll.u32 %v1252, 16
    %v1291 = vrot.slane %v1289, 1
    %v1292 = vsel %vm244, %v1287, %v1291
    %v1293 = vshrl.u32 %v1251, 16
    %v1295 = vor.u32 %v1293, %v1283
    %v1296 = vshrl.u32 %v1252, 16
    %v1298 = vor.u32 %v1296, %v1291
    %v1320 = vunpack.c.l.b16 %v1214
    %v1321 = vunpack.c.l.b16 %v1215
    %v1322 = vunpack.c.l.b16 %v1216
    %v1323 = vunpack.c.l.b16 %v1217
    %v1324 = vunpack.c.l.b16 %v1218
    %v1325 = vunpack.c.l.b16 %v1219
    %v1326 = vunpack.c.l.b16 %v1220
    %v1327 = vunpack.c.l.b16 %v1221
    %v1328 = vunpack.c.l.b16 %v1222
    %v1329 = vunpack.c.l.b16 %v1223
    %v1330 = vunpack.c.l.b16 %v1224
    %v1331 = vunpack.c.l.b16 %v1225
    %v1332 = vunpack.c.l.b16 %v1226
    %v1333 = vunpack.c.l.b16 %v1227
    %v1334 = vunpack.c.l.b16 %v1228
    %v1335 = vunpack.c.l.b16 %v1229
    %v1336 = vunpack.c.l.b16 %v1230
    %v1337 = vunpack.c.l.b16 %v1231
    %v1338 = vpack.c.b16 %v1321, %v1320
    %v1339 = vpack.c.b16 %v1323, %v1322
    %v1340 = vpack.c.b16 %v1325, %v1324
    %v1341 = vpack.c.b16 %v1327, %v1326
    %v1342 = vpack.c.b16 %v1329, %v1328
    %v1343 = vpack.c.b16 %v1331, %v1330
    %v1344 = vpack.c.b16 %v1333, %v1332
    %v1345 = vpack.c.b16 %v1335, %v1334
    %v1346 = vpack.c.b16 %v1337, %v1336
    %vm1356 = vcmask 130048
    %v1358 = vsel %vm1356, %v1276, 0
    %v1361 = vsel %vm1356, %v1292, 0
    %v1364 = vsel %vm1356, %v1298, 0
    %1366 = vmatprep.subr.bf16.mxu0 0
    %1367 = vmatpush1.bf16.msra.mxu0 %v1338
    %1368 = vmatprep.subr.bf16.mxu0 0
    %1369 = vmatpush1.bf16.msra.mxu0 %v1339
    %1370 = vmatprep.subr.bf16.mxu0 0
    %1371 = vmatpush1.bf16.msra.mxu0 %v1340
    %1372 = vmatprep.subr.bf16.mxu0 0
    %1373 = vmatpush1.bf16.msra.mxu0 %v1341
    %1374 = vmatprep.subr.bf16.mxu0 0
    %1375 = vmatpush1.bf16.msra.mxu0 %v1342
    %1376 = vmatprep.subr.bf16.mxu0 0
    %1377 = vmatpush1.bf16.msra.mxu0 %v1343
    %1378 = vmatprep.subr.bf16.mxu0 0
    %1379 = vmatpush1.bf16.msra.mxu0 %v1344
    %1380 = vmatprep.subr.bf16.mxu0 0
    %1381 = vmatpush1.bf16.msra.mxu0 %v1345
    %1382 = vmatprep.subr.bf16.mxu0 0
    %1383 = vmatpush1.bf16.msra.mxu0 %v1346
    %1384 = vmatprep.subr.bf16.mxu0 0
    %1385 = vmatpush1.bf16.msra.mxu0 0
    %1386 = vmatprep.subr.bf16.mxu0 0
    %1387 = vmatpush1.bf16.msra.mxu0 0
    %1388 = vmatprep.subr.bf16.mxu0 0
    %1389 = vmatpush1.bf16.msra.mxu0 0
    %1390 = vmatprep.subr.bf16.mxu0 0
    %1391 = vmatpush1.bf16.msra.mxu0 0
    %1392 = vmatprep.subr.bf16.mxu0 0
    %1393 = vmatpush1.bf16.msra.mxu0 0
    %1394 = vmatprep.subr.bf16.mxu0 0
    %1395 = vmatpush1.bf16.msra.mxu0 0
    %1396 = vmatprep.subr.bf16.mxu0 0
    %1397 = vmatpush1.bf16.msra.mxu0 0
    %1398 = vmatprep.mubr.bf16.mxu0 %v1358
    %1399 = vmatmul.mubr.bf16.gmra.mrb[0].mxu0 %v1264
    %v1400 = vpop.f32.mrb[0].mxu0
    %v1401 = vadd.f32 0.0, %v1400
    %v1402 = vpop.f32.mrb[0].mxu0
    %v1403 = vpop.f32.mrb[0].mxu0
    %v1404 = vadd.f32 0.0, %v1403
    %v1405 = vpop.f32.mrb[0].mxu0
    %1406 = vmatprep.mubr.bf16.mxu0 %v1361
    %1407 = vmatmul.mubr.bf16.gmra.mrb[0].mxu0 %v1284
    %v1408 = vpop.f32.mrb[0].mxu0
    %v1409 = vadd.f32 0.0, %v1408
    %v1410 = vpop.f32.mrb[0].mxu0
    %v1411 = vpop.f32.mrb[0].mxu0
    %v1412 = vadd.f32 0.0, %v1411
    %v1413 = vpop.f32.mrb[0].mxu0
    %1414 = vmatprep.mubr.bf16.mxu0 %v1364
    %1415 = vmatmul.mubr.bf16.gmra.mrb[0].mxu0 %v1295
    %v1416 = vpop.f32.mrb[0].mxu0
    %v1417 = vadd.f32 0.0, %v1416
    %v1418 = vpop.f32.mrb[0].mxu0
    %v1419 = vpop.f32.mrb[0].mxu0
    %v1420 = vpop.f32.mrb[0].mxu0
    %1421 = vdwg.mxu0
    %v1423 = vunpack.c.l.b16 %v1193
    %v1424 = vunpack.c.h.b16 %v1193
    %v1425 = vpack.c.b16 %v1423, %v1423
    %v1426 = vpack.c.b16 %v1424, %v1424
    %v1448 = vunpack.c.l.b16 %v1194
    %v1449 = vunpack.c.l.b16 %v1195
    %v1450 = vunpack.c.l.b16 %v1196
    %v1451 = vunpack.c.l.b16 %v1197
    %v1452 = vunpack.c.l.b16 %v1198
    %v1453 = vunpack.c.l.b16 %v1199
    %v1454 = vunpack.c.l.b16 %v1200
    %v1455 = vunpack.c.l.b16 %v1201
    %v1456 = vunpack.c.l.b16 %v1202
    %v1457 = vunpack.c.l.b16 %v1203
    %v1458 = vunpack.c.l.b16 %v1204
    %v1459 = vunpack.c.l.b16 %v1205
    %v1460 = vunpack.c.l.b16 %v1206
    %v1461 = vunpack.c.l.b16 %v1207
    %v1462 = vunpack.c.l.b16 %v1208
    %v1463 = vunpack.c.l.b16 %v1209
    %v1464 = vunpack.c.l.b16 %v1210
    %v1465 = vunpack.c.l.b16 %v1211
    %v1466 = vpack.c.b16 %v1449, %v1448
    %v1467 = vpack.c.b16 %v1451, %v1450
    %v1468 = vpack.c.b16 %v1453, %v1452
    %v1469 = vpack.c.b16 %v1455, %v1454
    %v1470 = vpack.c.b16 %v1457, %v1456
    %v1471 = vpack.c.b16 %v1459, %v1458
    %v1472 = vpack.c.b16 %v1461, %v1460
    %v1473 = vpack.c.b16 %v1463, %v1462
    %v1474 = vpack.c.b16 %v1465, %v1464
    %v1484 = vsel %vm1356, %v1248, 0
    %v1486 = vsel %vm1356, %v1250, 0
    %v1489 = vsel %vm1356, %v1426, 0
    %1491 = vmatprep.subr.bf16.mxu0 0
    %1492 = vmatpush1.bf16.msra.mxu0 %v1466
    %1493 = vmatprep.subr.bf16.mxu0 0
    %1494 = vmatpush1.bf16.msra.mxu0 %v1467
    %1495 = vmatprep.subr.bf16.mxu0 0
    %1496 = vmatpush1.bf16.msra.mxu0 %v1468
    %1497 = vmatprep.subr.bf16.mxu0 0
    %1498 = vmatpush1.bf16.msra.mxu0 %v1469
    %1499 = vmatprep.subr.bf16.mxu0 0
    %1500 = vmatpush1.bf16.msra.mxu0 %v1470
    %1501 = vmatprep.subr.bf16.mxu0 0
    %1502 = vmatpush1.bf16.msra.mxu0 %v1471
    %1503 = vmatprep.subr.bf16.mxu0 0
    %1504 = vmatpush1.bf16.msra.mxu0 %v1472
    %1505 = vmatprep.subr.bf16.mxu0 0
    %1506 = vmatpush1.bf16.msra.mxu0 %v1473
    %1507 = vmatprep.subr.bf16.mxu0 0
    %1508 = vmatpush1.bf16.msra.mxu0 %v1474
    %1509 = vmatprep.subr.bf16.mxu0 0
    %1510 = vmatpush1.bf16.msra.mxu0 0
    %1511 = vmatprep.subr.bf16.mxu0 0
    %1512 = vmatpush1.bf16.msra.mxu0 0
    %1513 = vmatprep.subr.bf16.mxu0 0
    %1514 = vmatpush1.bf16.msra.mxu0 0
    %1515 = vmatprep.subr.bf16.mxu0 0
    %1516 = vmatpush1.bf16.msra.mxu0 0
    %1517 = vmatprep.subr.bf16.mxu0 0
    %1518 = vmatpush1.bf16.msra.mxu0 0
    %1519 = vmatprep.subr.bf16.mxu0 0
    %1520 = vmatpush1.bf16.msra.mxu0 0
    %1521 = vmatprep.subr.bf16.mxu0 0
    %1522 = vmatpush1.bf16.msra.mxu0 0
    %1523 = vmatprep.mubr.bf16.mxu0 %v1484
    %1524 = vmatmul.mubr.bf16.gmra.mrb[0].mxu0 %v1247
    %v1525 = vpop.f32.mrb[0].mxu0
    %v1526 = vadd.f32 %v1401, %v1525
    %v1527 = vpop.f32.mrb[0].mxu0
    %v1528 = vpop.f32.mrb[0].mxu0
    %v1529 = vadd.f32 %v1404, %v1528
    %v1530 = vpop.f32.mrb[0].mxu0
    %1531 = vmatprep.mubr.bf16.mxu0 %v1486
    %1532 = vmatmul.mubr.bf16.gmra.mrb[0].mxu0 %v1249
    %v1533 = vpop.f32.mrb[0].mxu0
    %v1534 = vadd.f32 %v1409, %v1533
    %v1535 = vpop.f32.mrb[0].mxu0
    %v1536 = vpop.f32.mrb[0].mxu0
    %v1537 = vadd.f32 %v1412, %v1536
    %v1538 = vpop.f32.mrb[0].mxu0
    %1539 = vmatprep.mubr.bf16.mxu0 %v1489
    %1540 = vmatmul.mubr.bf16.gmra.mrb[0].mxu0 %v1425
    %v1541 = vpop.f32.mrb[0].mxu0
    %v1542 = vadd.f32 %v1417, %v1541
    %v1543 = vpop.f32.mrb[0].mxu0
    %v1544 = vpop.f32.mrb[0].mxu0
    %v1545 = vpop.f32.mrb[0].mxu0
    %1546 = vdwg.mxu0
    %v1547 = vld [vmem:[#allocation3] sm:$0xee]
    %s1548 = scalar_lea.vmem [#allocation4], 144
    %v1549 = vld [vmem:[%s1548] sm:$0xf]
    %v1550 = vld [vmem:[%s1548 + $0x4] sm:$0xf]
    %v1551 = vld [vmem:[%s1548 + $0x8] sm:$0xf]
    %v1552 = vld [vmem:[%s1548 + $0xc] sm:$0xf]
    %v1553 = vld [vmem:[%s1548 + $0x10] sm:$0xf]
    %v1554 = vld [vmem:[%s1548 + $0x14] sm:$0xf]
    %v1555 = vld [vmem:[%s1548 + $0x18] sm:$0xf]
    %v1556 = vld [vmem:[%s1548 + $0x1c] sm:$0xf]
    %v1557 = vld [vmem:[%s1548 + $0x20] sm:$0xf]
    %v1558 = vld [vmem:[%s1548 + $0x24] sm:$0xf]
    %v1559 = vld [vmem:[%s1548 + $0x28] sm:$0xf]
    %v1560 = vld [vmem:[%s1548 + $0x2c] sm:$0xf]
    %v1561 = vld [vmem:[%s1548 + $0x30] sm:$0xf]
    %v1562 = vld [vmem:[%s1548 + $0x34] sm:$0xf]
    %v1563 = vld [vmem:[%s1548 + $0x38] sm:$0xf]
    %v1564 = vld [vmem:[%s1548 + $0x3c] sm:$0xf]
    %v1565 = vld [vmem:[%s1548 + $0x40] sm:$0xf]
    %v1566 = vld [vmem:[%s1548 + $0x44] sm:$0xf]
    %v1568 = vunpack.c.l.b16 %v1547
    %v1569 = vunpack.c.h.b16 %v1547
    %v1570 = vpack.c.b16 %v1239, %v1568
    %v1571 = vpack.c.b16 %v1240, %v1569
    %v1572 = vrot.slane %v1570, 1
    %v1573 = vrot.slane %v1249, 1
    %v1574 = vsel %vm475, %v1572, %v1573
    %v1575 = vrot.slane %v1571, 1
    %v1576 = vrot.slane %v1250, 1
    %v1577 = vsel %vm475, %v1575, %v1576
    %v1578 = vrot.slane %v1251, 1
    %v1579 = vsel %vm475, %v1573, %v1578
    %v1580 = vrot.slane %v1252, 1
    %v1581 = vsel %vm475, %v1576, %v1580
    %v1603 = vunpack.c.l.b16 %v1549
    %v1604 = vunpack.c.l.b16 %v1550
    %v1605 = vunpack.c.l.b16 %v1551
    %v1606 = vunpack.c.l.b16 %v1552
    %v1607 = vunpack.c.l.b16 %v1553
    %v1608 = vunpack.c.l.b16 %v1554
    %v1609 = vunpack.c.l.b16 %v1555
    %v1610 = vunpack.c.l.b16 %v1556
    %v1611 = vunpack.c.l.b16 %v1557
    %v1612 = vunpack.c.l.b16 %v1558
    %v1613 = vunpack.c.l.b16 %v1559
    %v1614 = vunpack.c.l.b16 %v1560
    %v1615 = vunpack.c.l.b16 %v1561
    %v1616 = vunpack.c.l.b16 %v1562
    %v1617 = vunpack.c.l.b16 %v1563
    %v1618 = vunpack.c.l.b16 %v1564
    %v1619 = vunpack.c.l.b16 %v1565
    %v1620 = vunpack.c.l.b16 %v1566
    %v1621 = vpack.c.b16 %v1604, %v1603
    %v1622 = vpack.c.b16 %v1606, %v1605
    %v1623 = vpack.c.b16 %v1608, %v1607
    %v1624 = vpack.c.b16 %v1610, %v1609
    %v1625 = vpack.c.b16 %v1612, %v1611
    %v1626 = vpack.c.b16 %v1614, %v1613
    %v1627 = vpack.c.b16 %v1616, %v1615
    %v1628 = vpack.c.b16 %v1618, %v1617
    %v1629 = vpack.c.b16 %v1620, %v1619
    %v1640 = vsel %vm1356, %v1577, 0
    %v1643 = vsel %vm1356, %v1581, 0
    %v1646 = vsel %vm1356, %v1580, 0
    %1648 = vmatprep.subr.bf16.mxu0 0
    %1649 = vmatpush1.bf16.msra.mxu0 %v1621
    %1650 = vmatprep.subr.bf16.mxu0 0
    %1651 = vmatpush1.bf16.msra.mxu0 %v1622
    %1652 = vmatprep.subr.bf16.mxu0 0
    %1653 = vmatpush1.bf16.msra.mxu0 %v1623
    %1654 = vmatprep.subr.bf16.mxu0 0
    %1655 = vmatpush1.bf16.msra.mxu0 %v1624
    %1656 = vmatprep.subr.bf16.mxu0 0
    %1657 = vmatpush1.bf16.msra.mxu0 %v1625
    %1658 = vmatprep.subr.bf16.mxu0 0
    %1659 = vmatpush1.bf16.msra.mxu0 %v1626
    %1660 = vmatprep.subr.bf16.mxu0 0
    %1661 = vmatpush1.bf16.msra.mxu0 %v1627
    %1662 = vmatprep.subr.bf16.mxu0 0
    %1663 = vmatpush1.bf16.msra.mxu0 %v1628
    %1664 = vmatprep.subr.bf16.mxu0 0
    %1665 = vmatpush1.bf16.msra.mxu0 %v1629
    %1666 = vmatprep.subr.bf16.mxu0 0
    %1667 = vmatpush1.bf16.msra.mxu0 0
    %1668 = vmatprep.subr.bf16.mxu0 0
    %1669 = vmatpush1.bf16.msra.mxu0 0
    %1670 = vmatprep.subr.bf16.mxu0 0
    %1671 = vmatpush1.bf16.msra.mxu0 0
    %1672 = vmatprep.subr.bf16.mxu0 0
    %1673 = vmatpush1.bf16.msra.mxu0 0
    %1674 = vmatprep.subr.bf16.mxu0 0
    %1675 = vmatpush1.bf16.msra.mxu0 0
    %1676 = vmatprep.subr.bf16.mxu0 0
    %1677 = vmatpush1.bf16.msra.mxu0 0
    %1678 = vmatprep.subr.bf16.mxu0 0
    %1679 = vmatpush1.bf16.msra.mxu0 0
    %1680 = vmatprep.mubr.bf16.mxu0 %v1640
    %1681 = vmatmul.mubr.bf16.gmra.mrb[0].mxu0 %v1574
    %v1682 = vpop.f32.mrb[0].mxu0
    %v1683 = vadd.f32 0.0, %v1682
    %v1684 = vpop.f32.mrb[0].mxu0
    %v1685 = vpop.f32.mrb[0].mxu0
    %v1686 = vadd.f32 0.0, %v1685
    %v1687 = vpop.f32.mrb[0].mxu0
    %1688 = vmatprep.mubr.bf16.mxu0 %v1643
    %1689 = vmatmul.mubr.bf16.gmra.mrb[0].mxu0 %v1579
    %v1690 = vpop.f32.mrb[0].mxu0
    %v1691 = vadd.f32 0.0, %v1690
    %v1692 = vpop.f32.mrb[0].mxu0
    %v1693 = vpop.f32.mrb[0].mxu0
    %v1694 = vadd.f32 0.0, %v1693
    %v1695 = vpop.f32.mrb[0].mxu0
    %1696 = vmatprep.mubr.bf16.mxu0 %v1646
    %1697 = vmatmul.mubr.bf16.gmra.mrb[0].mxu0 %v1578
    %v1698 = vpop.f32.mrb[0].mxu0
    %v1699 = vadd.f32 0.0, %v1698
    %v1700 = vpop.f32.mrb[0].mxu0
    %v1701 = vpop.f32.mrb[0].mxu0
    %v1702 = vpop.f32.mrb[0].mxu0
    %1703 = vdwg.mxu0
    %v1704 = vadd.f32 %v1526, %v1683
    %v1705 = vadd.f32 %v1529, %v1686
    %v1706 = vadd.f32 %v1534, %v1691
    %v1707 = vadd.f32 %v1537, %v1694
    %v1708 = vadd.f32 %v1542, %v1699
    %v1709 = vmul.f32 %v1704, %v584
    %v1710 = vmul.f32 %v1705, %v589
    %v1711 = vmul.f32 %v1706, %v594
    %v1712 = vmul.f32 %v1707, %v599
    %v1713 = vmul.f32 %v1708, %v604
    %v1714 = vadd.f32 %v1709, %v1710
    %v1715 = vadd.f32 %v1714, %v1711
    %v1716 = vadd.f32 %v1715, %v1712
    %v1717 = vsel %vm614, %v1713, 0.0
    %v1718 = vadd.f32 %v1716, %v1717
    %v1719 = vrot.slane %v1718, 4
    %v1720 = vadd.f32 %v1718, %v1719
    %v1721 = vrot.slane %v1720, 2
    %v1722 = vadd.f32 %v1720, %v1721
    %v1723 = vrot.slane %v1722, 1
    %v1724 = vadd.f32 %v1722, %v1723
    %1725 = vmatprep.subr.mxu0 0.0
    %1726 = vmatpush1.msra.mxu0 %v51
    %1727 = vmatprep.subr.mxu0 0.0
    %1728 = vmatpush1.msra.mxu0 %v52
    %1729 = vmatprep.subr.mxu0 0.0
    %1730 = vmatpush1.msra.mxu0 %v53
    %1731 = vmatprep.subr.mxu0 0.0
    %1732 = vmatpush1.msra.mxu0 %v54
    %1733 = vmatprep.subr.mxu0 0.0
    %1734 = vmatpush1.msra.mxu0 %v55
    %1735 = vmatprep.subr.mxu0 0.0
    %1736 = vmatpush1.msra.mxu0 %v56
    %1737 = vmatprep.subr.mxu0 0.0
    %1738 = vmatpush1.msra.mxu0 %v57
    %1739 = vmatprep.subr.mxu0 0.0
    %1740 = vmatpush1.msra.mxu0 %v58
    %1741 = vmatprep.subr.mxu0 0.0
    %1742 = vmatpush1.msra.mxu0 %v59
    %1743 = vmatprep.subr.mxu0 0.0
    %1744 = vmatpush1.msra.mxu0 %v60
    %1745 = vmatprep.subr.mxu0 0.0
    %1746 = vmatpush1.msra.mxu0 %v61
    %1747 = vmatprep.subr.mxu0 0.0
    %1748 = vmatpush1.msra.mxu0 %v62
    %1749 = vmatprep.subr.mxu0 0.0
    %1750 = vmatpush1.msra.mxu0 %v63
    %1751 = vmatprep.subr.mxu0 0.0
    %1752 = vmatpush1.msra.mxu0 %v64
    %1753 = vmatprep.subr.mxu0 0.0
    %1754 = vmatpush1.msra.mxu0 %v65
    %1755 = vmatprep.subr.mxu0 0.0
    %1756 = vmatpush1.msra.mxu0 %v66
    %1757 = vmatprep.subr.mxu0 0.0
    %1758 = vmatpush1.msra.mxu0 0.0
    %1759 = vmatprep.subr.mxu0 0.0
    %1760 = vmatpush1.msra.mxu0 0.0
    %1761 = vmatprep.subr.mxu0 0.0
    %1762 = vmatpush1.msra.mxu0 0.0
    %1763 = vmatprep.subr.mxu0 0.0
    %1764 = vmatpush1.msra.mxu0 0.0
    %1765 = vmatprep.subr.mxu0 0.0
    %1766 = vmatpush1.msra.mxu0 0.0
    %1767 = vmatprep.subr.mxu0 0.0
    %1768 = vmatpush1.msra.mxu0 0.0
    %1769 = vmatprep.subr.mxu0 0.0
    %1770 = vmatpush1.msra.mxu0 0.0
    %1771 = vmatprep.subr.mxu0 0.0
    %1772 = vmatpush1.msra.mxu0 0.0
    %1773 = vmatprep.subr.mxu0 0.0
    %1774 = vmatpush1.msra.mxu0 0.0
    %1775 = vmatprep.subr.mxu0 0.0
    %1776 = vmatpush1.msra.mxu0 0.0
    %1777 = vmatprep.subr.mxu0 0.0
    %1778 = vmatpush1.msra.mxu0 0.0
    %1779 = vmatprep.subr.mxu0 0.0
    %1780 = vmatpush1.msra.mxu0 0.0
    %1781 = vmatprep.subr.mxu0 0.0
    %1782 = vmatpush1.msra.mxu0 0.0
    %1783 = vmatprep.subr.mxu0 0.0
    %1784 = vmatpush1.msra.mxu0 0.0
    %1785 = vmatprep.subr.mxu0 0.0
    %1786 = vmatpush1.msra.mxu0 0.0
    %1787 = vmatprep.subr.mxu0 0.0
    %1788 = vmatpush1.msra.mxu0 0.0
    %1789 = vmatprep.mubr.f32.mxu0 0.0
    %1790 = vmatmul.mubr.f32.gmra.mrb[0].mxu0 %v1724
    %v1791 = vpop.f32.mrb[0].mxu0
    %v1792 = vadd.f32 0.0, %v1791
    %v1793 = vpop.f32.mrb[0].mxu0
    %1794 = vdwg.mxu0
    %v1795 = vmul.f32 %v1792, 0.001953125
    %v1797 = vsel %vm694, %v1795, 0
    %1799 = vmatprep.subr.mxu0 0.0
    %1800 = vmatpush1.msra.mxu0 %v67
    %1801 = vmatprep.subr.mxu0 0.0
    %1802 = vmatpush1.msra.mxu0 0.0
    %1803 = vmatprep.subr.mxu0 0.0
    %1804 = vmatpush1.msra.mxu0 0.0
    %1805 = vmatprep.subr.mxu0 0.0
    %1806 = vmatpush1.msra.mxu0 0.0
    %1807 = vmatprep.subr.mxu0 0.0
    %1808 = vmatpush1.msra.mxu0 0.0
    %1809 = vmatprep.subr.mxu0 0.0
    %1810 = vmatpush1.msra.mxu0 0.0
    %1811 = vmatprep.subr.mxu0 0.0
    %1812 = vmatpush1.msra.mxu0 0.0
    %1813 = vmatprep.subr.mxu0 0.0
    %1814 = vmatpush1.msra.mxu0 0.0
    %1815 = vmatprep.subr.mxu0 0.0
    %1816 = vmatpush1.msra.mxu0 0.0
    %1817 = vmatprep.subr.mxu0 0.0
    %1818 = vmatpush1.msra.mxu0 0.0
    %1819 = vmatprep.subr.mxu0 0.0
    %1820 = vmatpush1.msra.mxu0 0.0
    %1821 = vmatprep.subr.mxu0 0.0
    %1822 = vmatpush1.msra.mxu0 0.0
    %1823 = vmatprep.subr.mxu0 0.0
    %1824 = vmatpush1.msra.mxu0 0.0
    %1825 = vmatprep.subr.mxu0 0.0
    %1826 = vmatpush1.msra.mxu0 0.0
    %1827 = vmatprep.subr.mxu0 0.0
    %1828 = vmatpush1.msra.mxu0 0.0
    %1829 = vmatprep.subr.mxu0 0.0
    %1830 = vmatpush1.msra.mxu0 0.0
    %1831 = vmatprep.subr.mxu0 0.0
    %1832 = vmatpush1.msra.mxu0 0.0
    %1833 = vmatprep.subr.mxu0 0.0
    %1834 = vmatpush1.msra.mxu0 0.0
    %1835 = vmatprep.subr.mxu0 0.0
    %1836 = vmatpush1.msra.mxu0 0.0
    %1837 = vmatprep.subr.mxu0 0.0
    %1838 = vmatpush1.msra.mxu0 0.0
    %1839 = vmatprep.subr.mxu0 0.0
    %1840 = vmatpush1.msra.mxu0 0.0
    %1841 = vmatprep.subr.mxu0 0.0
    %1842 = vmatpush1.msra.mxu0 0.0
    %1843 = vmatprep.subr.mxu0 0.0
    %1844 = vmatpush1.msra.mxu0 0.0
    %1845 = vmatprep.subr.mxu0 0.0
    %1846 = vmatpush1.msra.mxu0 0.0
    %1847 = vmatprep.subr.mxu0 0.0
    %1848 = vmatpush1.msra.mxu0 0.0
    %1849 = vmatprep.subr.mxu0 0.0
    %1850 = vmatpush1.msra.mxu0 0.0
    %1851 = vmatprep.subr.mxu0 0.0
    %1852 = vmatpush1.msra.mxu0 0.0
    %1853 = vmatprep.subr.mxu0 0.0
    %1854 = vmatpush1.msra.mxu0 0.0
    %1855 = vmatprep.subr.mxu0 0.0
    %1856 = vmatpush1.msra.mxu0 0.0
    %1857 = vmatprep.subr.mxu0 0.0
    %1858 = vmatpush1.msra.mxu0 0.0
    %1859 = vmatprep.subr.mxu0 0.0
    %1860 = vmatpush1.msra.mxu0 0.0
    %1861 = vmatprep.subr.mxu0 0.0
    %1862 = vmatpush1.msra.mxu0 0.0
    %1863 = vmatprep.mubr.f32.mxu0 0.0
    %1864 = vmatmul.mubr.f32.gmra.mrb[0].mxu0 %v1797
    %v1865 = vpop.f32.mrb[0].mxu0
    %v1866 = vadd.f32 0.0, %v1865
    %v1867 = vpop.f32.mrb[0].mxu0
    %1868 = vdwg.mxu0
    %v1869 = vlaneseq
    %v1870 = vshrl.u32 %v1869, 7
    %v1871 = vsub.s32 0, %v1870
    %v1872 = vrot.slane %v1866, %v1871
    %v1873 = vsub.f32 %v1704, %v1872
    %v1874 = vsub.f32 %v1705, %v1872
    %v1875 = vsub.f32 %v1706, %v1872
    %v1876 = vsub.f32 %v1707, %v1872
    %v1877 = vsub.f32 %v1708, %v1872
    %v1878 = vmul.f32 %v1873, %v584
    %v1879 = vmul.f32 %v1874, %v589
    %v1880 = vmul.f32 %v1875, %v594
    %v1881 = vmul.f32 %v1876, %v599
    %v1882 = vmul.f32 %v1877, %v604
    %v1883 = vmul.f32 %v1878, %v1878
    %v1884 = vmul.f32 %v1879, %v1879
    %v1885 = vmul.f32 %v1880, %v1880
    %v1886 = vmul.f32 %v1881, %v1881
    %v1887 = vmul.f32 %v1882, %v1882
    %v1888 = vadd.f32 %v1883, %v1884
    %v1889 = vadd.f32 %v1888, %v1885
    %v1890 = vadd.f32 %v1889, %v1886
    %v1891 = vsel %vm614, %v1887, 0.0
    %v1892 = vadd.f32 %v1890, %v1891
    %v1893 = vrot.slane %v1892, 4
    %v1894 = vadd.f32 %v1892, %v1893
    %v1895 = vrot.slane %v1894, 2
    %v1896 = vadd.f32 %v1894, %v1895
    %v1897 = vrot.slane %v1896, 1
    %v1898 = vadd.f32 %v1896, %v1897
    %1899 = vmatprep.subr.mxu0 0.0
    %1900 = vmatpush1.msra.mxu0 %v51
    %1901 = vmatprep.subr.mxu0 0.0
    %1902 = vmatpush1.msra.mxu0 %v52
    %1903 = vmatprep.subr.mxu0 0.0
    %1904 = vmatpush1.msra.mxu0 %v53
    %1905 = vmatprep.subr.mxu0 0.0
    %1906 = vmatpush1.msra.mxu0 %v54
    %1907 = vmatprep.subr.mxu0 0.0
    %1908 = vmatpush1.msra.mxu0 %v55
    %1909 = vmatprep.subr.mxu0 0.0
    %1910 = vmatpush1.msra.mxu0 %v56
    %1911 = vmatprep.subr.mxu0 0.0
    %1912 = vmatpush1.msra.mxu0 %v57
    %1913 = vmatprep.subr.mxu0 0.0
    %1914 = vmatpush1.msra.mxu0 %v58
    %1915 = vmatprep.subr.mxu0 0.0
    %1916 = vmatpush1.msra.mxu0 %v59
    %1917 = vmatprep.subr.mxu0 0.0
    %1918 = vmatpush1.msra.mxu0 %v60
    %1919 = vmatprep.subr.mxu0 0.0
    %1920 = vmatpush1.msra.mxu0 %v61
    %1921 = vmatprep.subr.mxu0 0.0
    %1922 = vmatpush1.msra.mxu0 %v62
    %1923 = vmatprep.subr.mxu0 0.0
    %1924 = vmatpush1.msra.mxu0 %v63
    %1925 = vmatprep.subr.mxu0 0.0
    %1926 = vmatpush1.msra.mxu0 %v64
    %1927 = vmatprep.subr.mxu0 0.0
    %1928 = vmatpush1.msra.mxu0 %v65
    %1929 = vmatprep.subr.mxu0 0.0
    %1930 = vmatpush1.msra.mxu0 %v66
    %1931 = vmatprep.subr.mxu0 0.0
    %1932 = vmatpush1.msra.mxu0 0.0
    %1933 = vmatprep.subr.mxu0 0.0
    %1934 = vmatpush1.msra.mxu0 0.0
    %1935 = vmatprep.subr.mxu0 0.0
    %1936 = vmatpush1.msra.mxu0 0.0
    %1937 = vmatprep.subr.mxu0 0.0
    %1938 = vmatpush1.msra.mxu0 0.0
    %1939 = vmatprep.subr.mxu0 0.0
    %1940 = vmatpush1.msra.mxu0 0.0
    %1941 = vmatprep.subr.mxu0 0.0
    %1942 = vmatpush1.msra.mxu0 0.0
    %1943 = vmatprep.subr.mxu0 0.0
    %1944 = vmatpush1.msra.mxu0 0.0
    %1945 = vmatprep.subr.mxu0 0.0
    %1946 = vmatpush1.msra.mxu0 0.0
    %1947 = vmatprep.subr.mxu0 0.0
    %1948 = vmatpush1.msra.mxu0 0.0
    %1949 = vmatprep.subr.mxu0 0.0
    %1950 = vmatpush1.msra.mxu0 0.0
    %1951 = vmatprep.subr.mxu0 0.0
    %1952 = vmatpush1.msra.mxu0 0.0
    %1953 = vmatprep.subr.mxu0 0.0
    %1954 = vmatpush1.msra.mxu0 0.0
    %1955 = vmatprep.subr.mxu0 0.0
    %1956 = vmatpush1.msra.mxu0 0.0
    %1957 = vmatprep.subr.mxu0 0.0
    %1958 = vmatpush1.msra.mxu0 0.0
    %1959 = vmatprep.subr.mxu0 0.0
    %1960 = vmatpush1.msra.mxu0 0.0
    %1961 = vmatprep.subr.mxu0 0.0
    %1962 = vmatpush1.msra.mxu0 0.0
    %1963 = vmatprep.mubr.f32.mxu0 0.0
    %1964 = vmatmul.mubr.f32.gmra.mrb[0].mxu0 %v1898
    %v1965 = vpop.f32.mrb[0].mxu0
    %v1966 = vadd.f32 0.0, %v1965
    %v1967 = vpop.f32.mrb[0].mxu0
    %1968 = vdwg.mxu0
    %v1969 = vmul.f32 %v1966, 0.001953125
    %v1970 = vld [vmem:[%s5] sm:$0x1]
    %v1971 = vadd.f32 %v1969, 1e-05
    %v1972 = vrsqrt.pop %v1971
    %v1973 = vmul.f32 %v1970, %v1972
    %v1975 = vsel %vm694, %v1973, 0
    %1977 = vmatprep.subr.mxu0 0.0
    %1978 = vmatpush1.msra.mxu0 %v67
    %1979 = vmatprep.subr.mxu0 0.0
    %1980 = vmatpush1.msra.mxu0 0.0
    %1981 = vmatprep.subr.mxu0 0.0
    %1982 = vmatpush1.msra.mxu0 0.0
    %1983 = vmatprep.subr.mxu0 0.0
    %1984 = vmatpush1.msra.mxu0 0.0
    %1985 = vmatprep.subr.mxu0 0.0
    %1986 = vmatpush1.msra.mxu0 0.0
    %1987 = vmatprep.subr.mxu0 0.0
    %1988 = vmatpush1.msra.mxu0 0.0
    %1989 = vmatprep.subr.mxu0 0.0
    %1990 = vmatpush1.msra.mxu0 0.0
    %1991 = vmatprep.subr.mxu0 0.0
    %1992 = vmatpush1.msra.mxu0 0.0
    %1993 = vmatprep.subr.mxu0 0.0
    %1994 = vmatpush1.msra.mxu0 0.0
    %1995 = vmatprep.subr.mxu0 0.0
    %1996 = vmatpush1.msra.mxu0 0.0
    %1997 = vmatprep.subr.mxu0 0.0
    %1998 = vmatpush1.msra.mxu0 0.0
    %1999 = vmatprep.subr.mxu0 0.0
    %2000 = vmatpush1.msra.mxu0 0.0
    %2001 = vmatprep.subr.mxu0 0.0
    %2002 = vmatpush1.msra.mxu0 0.0
    %2003 = vmatprep.subr.mxu0 0.0
    %2004 = vmatpush1.msra.mxu0 0.0
    %2005 = vmatprep.subr.mxu0 0.0
    %2006 = vmatpush1.msra.mxu0 0.0
    %2007 = vmatprep.subr.mxu0 0.0
    %2008 = vmatpush1.msra.mxu0 0.0
    %2009 = vmatprep.subr.mxu0 0.0
    %2010 = vmatpush1.msra.mxu0 0.0
    %2011 = vmatprep.subr.mxu0 0.0
    %2012 = vmatpush1.msra.mxu0 0.0
    %2013 = vmatprep.subr.mxu0 0.0
    %2014 = vmatpush1.msra.mxu0 0.0
    %2015 = vmatprep.subr.mxu0 0.0
    %2016 = vmatpush1.msra.mxu0 0.0
    %2017 = vmatprep.subr.mxu0 0.0
    %2018 = vmatpush1.msra.mxu0 0.0
    %2019 = vmatprep.subr.mxu0 0.0
    %2020 = vmatpush1.msra.mxu0 0.0
    %2021 = vmatprep.subr.mxu0 0.0
    %2022 = vmatpush1.msra.mxu0 0.0
    %2023 = vmatprep.subr.mxu0 0.0
    %2024 = vmatpush1.msra.mxu0 0.0
    %2025 = vmatprep.subr.mxu0 0.0
    %2026 = vmatpush1.msra.mxu0 0.0
    %2027 = vmatprep.subr.mxu0 0.0
    %2028 = vmatpush1.msra.mxu0 0.0
    %2029 = vmatprep.subr.mxu0 0.0
    %2030 = vmatpush1.msra.mxu0 0.0
    %2031 = vmatprep.subr.mxu0 0.0
    %2032 = vmatpush1.msra.mxu0 0.0
    %2033 = vmatprep.subr.mxu0 0.0
    %2034 = vmatpush1.msra.mxu0 0.0
    %2035 = vmatprep.subr.mxu0 0.0
    %2036 = vmatpush1.msra.mxu0 0.0
    %2037 = vmatprep.subr.mxu0 0.0
    %2038 = vmatpush1.msra.mxu0 0.0
    %2039 = vmatprep.subr.mxu0 0.0
    %2040 = vmatpush1.msra.mxu0 0.0
    %2041 = vmatprep.mubr.f32.mxu0 0.0
    %2042 = vmatmul.mubr.f32.gmra.mrb[0].mxu0 %v1975
    %v2043 = vpop.f32.mrb[0].mxu0
    %v2044 = vadd.f32 0.0, %v2043
    %v2045 = vpop.f32.mrb[0].mxu0
    %2046 = vdwg.mxu0
    %v2047 = vld [vmem:[%s6] sm:$0x1]
    %v2049 = vsel %vm694, %v2047, 0
    %2051 = vmatprep.subr.mxu0 0.0
    %2052 = vmatpush1.msra.mxu0 %v67
    %2053 = vmatprep.subr.mxu0 0.0
    %2054 = vmatpush1.msra.mxu0 0.0
    %2055 = vmatprep.subr.mxu0 0.0
    %2056 = vmatpush1.msra.mxu0 0.0
    %2057 = vmatprep.subr.mxu0 0.0
    %2058 = vmatpush1.msra.mxu0 0.0
    %2059 = vmatprep.subr.mxu0 0.0
    %2060 = vmatpush1.msra.mxu0 0.0
    %2061 = vmatprep.subr.mxu0 0.0
    %2062 = vmatpush1.msra.mxu0 0.0
    %2063 = vmatprep.subr.mxu0 0.0
    %2064 = vmatpush1.msra.mxu0 0.0
    %2065 = vmatprep.subr.mxu0 0.0
    %2066 = vmatpush1.msra.mxu0 0.0
    %2067 = vmatprep.subr.mxu0 0.0
    %2068 = vmatpush1.msra.mxu0 0.0
    %2069 = vmatprep.subr.mxu0 0.0
    %2070 = vmatpush1.msra.mxu0 0.0
    %2071 = vmatprep.subr.mxu0 0.0
    %2072 = vmatpush1.msra.mxu0 0.0
    %2073 = vmatprep.subr.mxu0 0.0
    %2074 = vmatpush1.msra.mxu0 0.0
    %2075 = vmatprep.subr.mxu0 0.0
    %2076 = vmatpush1.msra.mxu0 0.0
    %2077 = vmatprep.subr.mxu0 0.0
    %2078 = vmatpush1.msra.mxu0 0.0
    %2079 = vmatprep.subr.mxu0 0.0
    %2080 = vmatpush1.msra.mxu0 0.0
    %2081 = vmatprep.subr.mxu0 0.0
    %2082 = vmatpush1.msra.mxu0 0.0
    %2083 = vmatprep.subr.mxu0 0.0
    %2084 = vmatpush1.msra.mxu0 0.0
    %2085 = vmatprep.subr.mxu0 0.0
    %2086 = vmatpush1.msra.mxu0 0.0
    %2087 = vmatprep.subr.mxu0 0.0
    %2088 = vmatpush1.msra.mxu0 0.0
    %2089 = vmatprep.subr.mxu0 0.0
    %2090 = vmatpush1.msra.mxu0 0.0
    %2091 = vmatprep.subr.mxu0 0.0
    %2092 = vmatpush1.msra.mxu0 0.0
    %2093 = vmatprep.subr.mxu0 0.0
    %2094 = vmatpush1.msra.mxu0 0.0
    %2095 = vmatprep.subr.mxu0 0.0
    %2096 = vmatpush1.msra.mxu0 0.0
    %2097 = vmatprep.subr.mxu0 0.0
    %2098 = vmatpush1.msra.mxu0 0.0
    %2099 = vmatprep.subr.mxu0 0.0
    %2100 = vmatpush1.msra.mxu0 0.0
    %2101 = vmatprep.subr.mxu0 0.0
    %2102 = vmatpush1.msra.mxu0 0.0
    %2103 = vmatprep.subr.mxu0 0.0
    %2104 = vmatpush1.msra.mxu0 0.0
    %2105 = vmatprep.subr.mxu0 0.0
    %2106 = vmatpush1.msra.mxu0 0.0
    %2107 = vmatprep.subr.mxu0 0.0
    %2108 = vmatpush1.msra.mxu0 0.0
    %2109 = vmatprep.subr.mxu0 0.0
    %2110 = vmatpush1.msra.mxu0 0.0
    %2111 = vmatprep.subr.mxu0 0.0
    %2112 = vmatpush1.msra.mxu0 0.0
    %2113 = vmatprep.subr.mxu0 0.0
    %2114 = vmatpush1.msra.mxu0 0.0
    %2115 = vmatprep.mubr.f32.mxu0 0.0
    %2116 = vmatmul.mubr.f32.gmra.mrb[0].mxu0 %v2049
    %v2117 = vpop.f32.mrb[0].mxu0
    %v2118 = vadd.f32 0.0, %v2117
    %v2119 = vpop.f32.mrb[0].mxu0
    %2120 = vdwg.mxu0
    %v2121 = vlaneseq
    %v2122 = vshrl.u32 %v2121, 7
    %v2123 = vsub.s32 0, %v2122
    %v2124 = vrot.slane %v2044, %v2123
    %v2125 = vmul.f32 %v1878, %v2124
    %v2126 = vmul.f32 %v1879, %v2124
    %v2127 = vmul.f32 %v1880, %v2124
    %v2128 = vmul.f32 %v1881, %v2124
    %v2129 = vmul.f32 %v1882, %v2124
    %v2130 = vlaneseq
    %v2131 = vshrl.u32 %v2130, 7
    %v2132 = vsub.s32 0, %v2131
    %v2133 = vrot.slane %v2118, %v2132
    %v2134 = vadd.f32 %v2125, %v2133
    %v2135 = vadd.f32 %v2126, %v2133
    %v2136 = vadd.f32 %v2127, %v2133
    %v2137 = vadd.f32 %v2128, %v2133
    %v2138 = vadd.f32 %v2129, %v2133
    %v2139 = vmax.f32 %v2134, 0.0
    %v2140 = vmax.f32 %v2135, 0.0
    %v2141 = vmax.f32 %v2136, 0.0
    %v2142 = vmax.f32 %v2137, 0.0
    %v2143 = vmax.f32 %v2138, 0.0
    %v2144 = vmul.f32 %v2139, %v584
    %v2145 = vmul.f32 %v2140, %v589
    %v2146 = vmul.f32 %v2141, %v594
    %v2147 = vmul.f32 %v2142, %v599
    %v2148 = vmul.f32 %v2143, %v604
    %2149 = vst [vmem:[#allocation7] sm:$0xff] %v2144
    %2150 = vst [vmem:[#allocation7 + $0x8] sm:$0xff] %v2145
    %2151 = vst [vmem:[#allocation7 + $0xe] sm:$0xfc] %v2146
    %2152 = vst [vmem:[#allocation7 + $0x16] sm:$0xff] %v2147
    %2153 = vst [vmem:[#allocation7 + $0x1e] sm:$0x3] %v2148
    // Predicated region
    $region46: #{tpu_custom_call.1} parent=1 // pred_check
      _
    $region47: #{tpu_custom_call.1} parent=1 // pred_check_branch
      %2155 = sbr.rel (0) target = $region49
    $region48: #{tpu_custom_call.1} parent=1 // pred_region
      %s2157 = ssub.s32 512, 512
      %2158 = vsyncadd [#allocation6], %s2157
      %s2159 = sshll.u32 [#allocation7], 4
      %s2160 = int_to_ptr.vmem [resolvable:$true] %s2159
      %2165 = dma.vmem_to_hbm [thread:$0]  %s2160, 512, %s10, [#allocation6], 128, 128, 8
    $region49: #{tpu_custom_call.1} parent=1 // pred_fallthru
      _
    // Predicated region
    $region50: #{tpu_custom_call.1} parent=1 // pred_check
      _
    $region51: #{tpu_custom_call.1} parent=1 // pred_check_branch
      %2167 = sbr.rel (0) target = $region53
    $region52: #{tpu_custom_call.1} parent=1 // pred_region
      %2168 = dma.done [#allocation6], 512
    $region53: #{tpu_custom_call.1} parent=1 // pred_fallthru
      _
    %2169 = vsyncpa [#allocation5], 1
    %2170 = vsyncpa [#allocation6], 1

</llo_original>
